<compile_context>
chip_gen: v5e
topology: v5e:2x2
jax: 0.10.0
libtpu: 0.0.40
codegen_flags: <defaults>
</compile_context>

<pallas_src>
import jax
import jax.numpy as jnp
import numpy as np
from jax import lax
from jax.experimental import pallas as pl
from jax.experimental.pallas import tpu as pltpu


# ---------------------------------------------------------------------------
# Kernel
# ---------------------------------------------------------------------------
def _upsample1d_kernel(x_ref, w_ref, b_ref, h_ref, o_ref):
    # x_ref: (1, TL, C)      input tile (native / compute dtype)
    # w_ref: (C, 4C)         fused weight [w0 | w1 | w2 | w3]
    # b_ref: (1, C)          bias
    # h_ref: (1, nT, 2, C)   per-batch halo rows: [:, i, 0] = x[i*TL-1], [:, i, 1] = x[(i+1)*TL]
    # o_ref: (1, TL, 2C)     packed output: [even | odd] along channels
    i = pl.program_id(1)
    x = x_ref[0]                                   # (TL, C)
    TL, C = x.shape
    w = w_ref[...]                                 # (C, 4C)

    # One fused MXU matmul over all 4 taps, f32 accumulation.
    y = jnp.dot(x, w, preferred_element_type=jnp.float32)              # (TL, 4C)
    # Halo rows' products (2 rows -> negligible extra MXU work).
    hy = jnp.dot(h_ref[0, i], w, preferred_element_type=jnp.float32)   # (2, 4C)

    y0 = y[:, 0 * C:1 * C]            # x[t]   @ w0
    y1 = y[:, 1 * C:2 * C]            # x[t]   @ w1
    y2 = y[:, 2 * C:3 * C]            # x[t]   @ w2
    y3 = y[:, 3 * C:4 * C]            # x[t]   @ w3
    p_prev3 = hy[0:1, 3 * C:4 * C]    # (1, C) = x[t0-1]  @ w3
    p_next0 = hy[1:2, 0 * C:1 * C]    # (1, C) = x[t0+TL] @ w0

    # (TL, 1) row index; jnp.where broadcasts it across lanes (cheap VPU mask).
    row = lax.broadcasted_iota(jnp.int32, (TL, 1), 0)
    # Shift y3 down one row (y3_dn[r] = y3[r-1]); first row comes from the halo.
    y3_dn = jnp.where(row == 0, p_prev3, pltpu.roll(y3, shift=1, axis=0))
    # Shift y0 up one row (y0_up[r] = y0[r+1]); last row comes from the halo.
    y0_up = jnp.where(row == TL - 1, p_next0, pltpu.roll(y0, shift=TL - 1, axis=0))

    b = b_ref[...].astype(jnp.float32)             # (1, C)
    o_ref[0, :, 0:C] = (y1 + y3_dn + b).astype(o_ref.dtype)       # out[2t]
    o_ref[0, :, C:2 * C] = (y2 + y0_up + b).astype(o_ref.dtype)   # out[2t+1]


# ---------------------------------------------------------------------------
# VMEM / tiling policy (generation-aware)
# ---------------------------------------------------------------------------
def _vmem_capacity_bytes():
    try:
        cap = int(pltpu.get_tpu_info().vmem_capacity_bytes)
        if cap > 0:
            return cap
    except Exception:
        pass
    return 64 * 1024 * 1024   # conservative default (v7x-class per-core VMEM)


def _vmem_estimate(TL, C, L, itemsize):
    nT = max(1, L // max(TL, 1))
    x_buf = 2 * TL * C * itemsize              # double-buffered input tile
    w_buf = 4 * C * C * itemsize               # fused weight, single-buffered
    b_buf = C * itemsize                       # bias, single-buffered
    halo_buf = 2 * nT * 2 * C * itemsize       # per-batch halo rows (double-buffered)
    out_buf = 2 * TL * 2 * C * itemsize        # double-buffered output tile
    temps = 40 * TL * C                        # f32 body temporaries (y=16*TL*C, shifts, sums, casts)
    return x_buf + w_buf + b_buf + halo_buf + out_buf + temps


def _sublane_step(itemsize):
    # Native sublane tile height per dtype width: f32->8, bf16->16, int8/fp8->32.
    return {4: 8, 2: 16, 1: 32}.get(int(itemsize), 8)


def _pick_block_l(L, C, itemsize, n_batch, budget_bytes, max_rows=2048):
    step = _sublane_step(itemsize)
    if L % step != 0:
        step = 8
    if L % step != 0:
        # Last resort: one full-length block (block dim == array dim is always legal).
        return L
    cands = [d for d in range(step, min(L, max_rows) + 1, step)
             if L % d == 0 and _vmem_estimate(d, C, L, itemsize) <= budget_bytes]
    if not cands:
        cands = [step]
    if n_batch == 1:
        # v7x has two TensorCores: keep the grid at >= 2 steps so both get work.
        split = [d for d in cands if L // d >= 2]
        if split:
            return max(split)
    return max(cands)


# ---------------------------------------------------------------------------
# Wrappers
# ---------------------------------------------------------------------------
def upsample1d_nlc(x_nlc, weight, bias, *, block_l=None, compute_dtype=None,
                   pad_channels=True):
    """
    Channels-last core (no transposes).
      x_nlc:  (N, L, C)
      weight: (C_in, C_out, 4)  PyTorch ConvTranspose1d weight (C_in == C_out == C)
      bias:   (C,)
    returns (N, 2L, C)
    """
    N, L, C = x_nlc.shape
    assert weight.shape == (C, C, 4), weight.shape
    out_dtype = x_nlc.dtype

    # Pad channels to a lane multiple so both half-slab stores are unmasked vst.
    Cp = C
    if pad_channels and C % 128 != 0:
        Cp = 128 * int(pl.cdiv(C, 128))
        x_nlc = jnp.pad(x_nlc, ((0, 0), (0, 0), (0, Cp - C)))
        weight = jnp.pad(weight, ((0, Cp - C), (0, Cp - C), (0, 0)))
        bias = jnp.pad(bias, ((0, Cp - C),))

    # Optional low-precision MXU path (mainly for v5e); accumulation stays f32.
    if compute_dtype is not None:
        x_nlc = x_nlc.astype(compute_dtype)
        weight = weight.astype(compute_dtype)

    itemsize = jnp.dtype(x_nlc.dtype).itemsize

    # Generation-aware VMEM budget.
    cap = _vmem_capacity_bytes()                           # 64 MiB v7x, 128 MiB v5e/v6e
    limit_cap = min(cap - (8 << 20), int(cap * 0.8))       # headroom for compiler scratch
    tile_budget = limit_cap - (2 << 20)

    TL = block_l if block_l is not None else _pick_block_l(L, Cp, itemsize, N, tile_budget)
    assert L % TL == 0, f"block_l={TL} must divide L={L}"
    nT = L // TL

    est = _vmem_estimate(TL, Cp, L, itemsize)
    vmem_limit = int(min(max(est + (4 << 20), 32 << 20), limit_cap))

    # Fused weight: columns [w0 | w1 | w2 | w3], shape (Cp, 4Cp).
    w_all = jnp.transpose(weight, (0, 2, 1)).reshape(Cp, 4 * Cp)
    b_2d = bias.reshape(1, Cp)

    # Per-batch halo rows: [:, i, 0] = x[i*TL - 1] (zero at i=0),
    #                      [:, i, 1] = x[(i+1)*TL] (zero at i=nT-1).
    x_r = x_nlc.reshape(N, nT, TL, Cp)
    zero = jnp.zeros((N, 1, Cp), dtype=x_nlc.dtype)
    halo_prev = jnp.concatenate([zero, x_r[:, :-1, TL - 1, :]], axis=1)   # (N, nT, Cp)
    halo_next = jnp.concatenate([x_r[:, 1:, 0, :], zero], axis=1)         # (N, nT, Cp)
    halo = jnp.stack([halo_prev, halo_next], axis=2)                      # (N, nT, 2, Cp)

    def _build(single_buffer_consts):
        const_mode = {"pipeline_mode": pl.Buffered(1)} if single_buffer_consts else {}
        return pl.pallas_call(
            _upsample1d_kernel,
            out_shape=jax.ShapeDtypeStruct((N, L, 2 * Cp), out_dtype),
            grid_spec=pltpu.PrefetchScalarGridSpec(
                num_scalar_prefetch=0,
                grid=(N, nT),
                in_specs=[
                    pl.BlockSpec((1, TL, Cp), lambda n, i: (n, i, 0)),
                    pl.BlockSpec((Cp, 4 * Cp), lambda n, i: (0, 0), **const_mode),
                    pl.BlockSpec((1, Cp), lambda n, i: (0, 0), **const_mode),
                    pl.BlockSpec((1, nT, 2, Cp), lambda n, i: (n, 0, 0, 0)),
                ],
                out_specs=pl.BlockSpec((1, TL, 2 * Cp), lambda n, i: (n, i, 0)),
            ),
            compiler_params=pltpu.CompilerParams(
                dimension_semantics=("parallel", "parallel"),
                vmem_limit_bytes=vmem_limit,
            ),
        )

    try:
        out_packed = _build(True)(x_nlc, w_all, b_2d, halo)
    except Exception:
        # Fallback: this jax build rejects pl.Buffered(1) -> default double buffering.
        out_packed = _build(False)(x_nlc, w_all, b_2d, halo)

    # (N, L, 2Cp) -> (N, 2L, Cp): free row-major reshape interleaving even/odd rows.
    out = out_packed.reshape(N, 2 * L, Cp)
    if Cp != C:
        out = out[:, :, :C]
    return out


def upsample1d(x_ncl, weight, bias, *, block_l=None, compute_dtype=None,
               pad_channels=True):
    """PyTorch-facing wrapper: (N, C, L) -> (N, C, 2L).

    NOTE: the two transposes here are full HBM passes on x and on the 2x-larger
    output; prefer `upsample1d_nlc` when the surrounding model can stay
    channels-last."""
    x_nlc = jnp.transpose(x_ncl, (0, 2, 1))
    out_nlc = upsample1d_nlc(x_nlc, weight, bias, block_l=block_l,
                             compute_dtype=compute_dtype, pad_channels=pad_channels)
    return jnp.transpose(out_nlc, (0, 2, 1))


# ---------------------------------------------------------------------------
# Reference + tests
# ---------------------------------------------------------------------------
def _reference_conv_transpose1d(x, w, b):
    """ConvTranspose1d(k=4, s=2, p=1) reference (numpy, f64)."""
    x = np.asarray(x, np.float64)
    w = np.asarray(w, np.float64)
    b = np.asarray(b, np.float64)
    N, C_in, L = x.shape
    _, C_out, K = w.shape
    stride, pad = 2, 1
    L_out = (L - 1) * stride - 2 * pad + K
    out = np.zeros((N, C_out, L_out))
    for s in range(L):
        for k in range(K):
            t = s * stride - pad + k
            if 0 <= t < L_out:
                out[:, :, t] += x[:, :, s] @ w[:, :, k]
    out += b[None, :, None]
    return out.astype(np.float32)


if __name__ == "__main__":
    key = jax.random.PRNGKey(0)

    # Case 1: small dims (C=8 -> padded to 128 lanes), 2 L-tiles -> inter-tile halo.
    N, C, L = 2, 8, 16
    k1, k2, k3, key = jax.random.split(key, 4)
    x = jax.random.normal(k1, (N, C, L), dtype=jnp.float32)
    weight = jax.random.normal(k2, (C, C, 4), dtype=jnp.float32) * 0.1
    bias = jax.random.normal(k3, (C,), dtype=jnp.float32) * 0.1
    out = jax.block_until_ready(upsample1d(x, weight, bias, block_l=8))
    assert out.shape == (N, C, 2 * L), out.shape
    np.testing.assert_allclose(np.asarray(out),
                               _reference_conv_transpose1d(x, weight, bias),
                               rtol=1e-5, atol=1e-5)

    # Case 2: lane-aligned channels (C=128, no padding path), 4 L-tiles.
    N, C, L = 1, 128, 32
    k1, k2, k3, key = jax.random.split(key, 4)
    x = jax.random.normal(k1, (N, C, L), dtype=jnp.float32)
    weight = jax.random.normal(k2, (C, C, 4), dtype=jnp.float32) * 0.05
    bias = jax.random.normal(k3, (C,), dtype=jnp.float32) * 0.1
    out = jax.block_until_ready(upsample1d(x, weight, bias, block_l=8))
    assert out.shape == (N, C, 2 * L), out.shape
    np.testing.assert_allclose(np.asarray(out),
                               _reference_conv_transpose1d(x, weight, bias),
                               rtol=1e-4, atol=1e-4)

    # Case 3: channels-last entry point, automatic tile selection, N=1
    # (auto picker must keep the grid at >= 2 steps for dual-TC parts).
    N, C, L = 1, 32, 64
    k1, k2, k3, key = jax.random.split(key, 4)
    x_nlc = jax.random.normal(k1, (N, L, C), dtype=jnp.float32)
    weight = jax.random.normal(k2, (C, C, 4), dtype=jnp.float32) * 0.1
    bias = jax.random.normal(k3, (C,), dtype=jnp.float32) * 0.1
    out_nlc = jax.block_until_ready(upsample1d_nlc(x_nlc, weight, bias))
    assert out_nlc.shape == (N, 2 * L, C), out_nlc.shape
    ref = _reference_conv_transpose1d(np.transpose(np.asarray(x_nlc), (0, 2, 1)),
                                      weight, bias)
    np.testing.assert_allclose(np.transpose(np.asarray(out_nlc), (0, 2, 1)), ref,
                               rtol=1e-4, atol=1e-4)

    # Case 4: bf16 inputs (sublane step 16), explicit 2 L-tiles.
    N, C, L = 2, 16, 32
    k1, k2, k3, key = jax.random.split(key, 4)
    x = jax.random.normal(k1, (N, C, L), dtype=jnp.float32).astype(jnp.bfloat16)
    weight = (jax.random.normal(k2, (C, C, 4), dtype=jnp.float32) * 0.1).astype(jnp.bfloat16)
    bias = (jax.random.normal(k3, (C,), dtype=jnp.float32) * 0.1).astype(jnp.bfloat16)
    out = jax.block_until_ready(upsample1d(x, weight, bias, block_l=16))
    assert out.shape == (N, C, 2 * L), out.shape
    ref = _reference_conv_transpose1d(np.asarray(x.astype(jnp.float32)),
                                      np.asarray(weight.astype(jnp.float32)),
                                      np.asarray(bias.astype(jnp.float32)))
    np.testing.assert_allclose(np.asarray(out.astype(jnp.float32)), ref,
                               rtol=5e-2, atol=5e-2)

    print("KERNEL_OK")
</pallas_src>

<mosaic_0001>
module attributes {stable_mosaic.version = 11 : i64} {
  func.func @_upsample1d_kernel(%arg0: i32, %arg1: i32, %arg2: memref<1x8x128xf32, #tpu.memory_space<vmem>>, %arg3: memref<128x512xf32, #tpu.memory_space<vmem>>, %arg4: memref<1x128xf32, #tpu.memory_space<vmem>>, %arg5: memref<1x2x2x128xf32, #tpu.memory_space<vmem>>, %arg6: memref<1x8x256xf32, #tpu.memory_space<vmem>>) attributes {dimension_semantics = [#tpu.dimension_semantics<parallel>, #tpu.dimension_semantics<parallel>], iteration_bounds = array<i64: 2, 2>, scalar_prefetch = 0 : i64, scratch_operands = 0 : i64, tpu.core_type = #tpu.core_type<tc>, window_params = [{transform_indices = @transform_0, window_bounds = array<i64: 1, 8, 128>}, {pipeline_mode = #tpu.pipeline_mode<synchronous>, transform_indices = @transform_1, window_bounds = array<i64: 128, 512>}, {pipeline_mode = #tpu.pipeline_mode<synchronous>, transform_indices = @transform_2, window_bounds = array<i64: 1, 128>}, {transform_indices = @transform_3, window_bounds = array<i64: 1, 2, 2, 128>}, {transform_indices = @transform_4, window_bounds = array<i64: 1, 8, 256>}]} {
    %c0 = arith.constant 0 : index
    %c0_0 = arith.constant 0 : index
    %c0_1 = arith.constant 0 : index
    %0 = vector.load %arg2[%c0, %c0_0, %c0_1] : memref<1x8x128xf32, #tpu.memory_space<vmem>>, vector<1x8x128xf32>
    %1 = vector.shape_cast %0 : vector<1x8x128xf32> to vector<8x128xf32>
    %c0_2 = arith.constant 0 : index
    %c0_3 = arith.constant 0 : index
    %2 = vector.load %arg3[%c0_2, %c0_3] : memref<128x512xf32, #tpu.memory_space<vmem>>, vector<128x512xf32>
    %cst = arith.constant dense<0.000000e+00> : vector<8x512xf32>
    %3 = tpu.matmul %1, %2, %cst {dimension_numbers = #tpu.dot_dimension_numbers<[1], [0], [0], [1], [0, 0, 1, 1], [], []>} : vector<8x128xf32>, vector<128x512xf32>, vector<8x512xf32> -> vector<8x512xf32>
    %c0_4 = arith.constant 0 : index
    %4 = arith.index_cast %arg1 : i32 to index
    %c0_5 = arith.constant 0 : index
    %c0_6 = arith.constant 0 : index
    %5 = vector.load %arg5[%c0_4, %4, %c0_5, %c0_6] : memref<1x2x2x128xf32, #tpu.memory_space<vmem>>, vector<1x1x2x128xf32>
    %6 = vector.shape_cast %5 : vector<1x1x2x128xf32> to vector<2x128xf32>
    %cst_7 = arith.constant dense<0.000000e+00> : vector<2x512xf32>
    %7 = tpu.matmul %6, %2, %cst_7 {dimension_numbers = #tpu.dot_dimension_numbers<[1], [0], [0], [1], [0, 0, 1, 1], [], []>} : vector<2x128xf32>, vector<128x512xf32>, vector<2x512xf32> -> vector<2x512xf32>
    %8 = vector.extract_strided_slice %3 {offsets = [0, 0], sizes = [8, 128], strides = [1, 1]} : vector<8x512xf32> to vector<8x128xf32>
    %9 = vector.extract_strided_slice %3 {offsets = [0, 128], sizes = [8, 128], strides = [1, 1]} : vector<8x512xf32> to vector<8x128xf32>
    %10 = vector.extract_strided_slice %3 {offsets = [0, 256], sizes = [8, 128], strides = [1, 1]} : vector<8x512xf32> to vector<8x128xf32>
    %11 = vector.extract_strided_slice %3 {offsets = [0, 384], sizes = [8, 128], strides = [1, 1]} : vector<8x512xf32> to vector<8x128xf32>
    %12 = vector.extract_strided_slice %7 {offsets = [0, 384], sizes = [1, 128], strides = [1, 1]} : vector<2x512xf32> to vector<1x128xf32>
    %13 = vector.extract_strided_slice %7 {offsets = [1, 0], sizes = [1, 128], strides = [1, 1]} : vector<2x512xf32> to vector<1x128xf32>
    %14 = tpu.iota {dimensions = array<i32: 0>} : vector<8x1xi32>
    %c0_i32 = arith.constant 0 : i32
    %15 = vector.broadcast %c0_i32 : i32 to vector<8x1xi32>
    %16 = arith.cmpi eq, %14, %15 : vector<8x1xi32>
    %c1_i32 = arith.constant 1 : i32
    %17 = tpu.dynamic_rotate %11 by %c1_i32 dim 0 : vector<8x128xf32>, i32 -> vector<8x128xf32>
    %18 = vector.shape_cast %16 : vector<8x1xi1> to vector<8x1xi1>
    %19 = vector.broadcast %18 : vector<8x1xi1> to vector<8x128xi1>
    %20 = vector.shape_cast %12 : vector<1x128xf32> to vector<1x128xf32>
    %21 = vector.broadcast %20 : vector<1x128xf32> to vector<8x128xf32>
    %22 = arith.select %19, %21, %17 : vector<8x128xi1>, vector<8x128xf32>
    %c7_i32 = arith.constant 7 : i32
    %23 = vector.broadcast %c7_i32 : i32 to vector<8x1xi32>
    %24 = arith.cmpi eq, %14, %23 : vector<8x1xi32>
    %c7_i32_8 = arith.constant 7 : i32
    %25 = tpu.dynamic_rotate %8 by %c7_i32_8 dim 0 : vector<8x128xf32>, i32 -> vector<8x128xf32>
    %26 = vector.shape_cast %24 : vector<8x1xi1> to vector<8x1xi1>
    %27 = vector.broadcast %26 : vector<8x1xi1> to vector<8x128xi1>
    %28 = vector.shape_cast %13 : vector<1x128xf32> to vector<1x128xf32>
    %29 = vector.broadcast %28 : vector<1x128xf32> to vector<8x128xf32>
    %30 = arith.select %27, %29, %25 : vector<8x128xi1>, vector<8x128xf32>
    %c0_9 = arith.constant 0 : index
    %c0_10 = arith.constant 0 : index
    %31 = vector.load %arg4[%c0_9, %c0_10] : memref<1x128xf32, #tpu.memory_space<vmem>>, vector<1x128xf32>
    %32 = arith.addf %9, %22 : vector<8x128xf32>
    %33 = vector.broadcast %31 : vector<1x128xf32> to vector<8x128xf32>
    %34 = arith.addf %32, %33 : vector<8x128xf32>
    %c0_11 = arith.constant 0 : index
    %c0_12 = arith.constant 0 : index
    %c0_13 = arith.constant 0 : index
    %35 = vector.load %arg6[%c0_11, %c0_12, %c0_13] : memref<1x8x256xf32, #tpu.memory_space<vmem>>, vector<1x8x128xf32>
    %36 = vector.shape_cast %35 : vector<1x8x128xf32> to vector<8x128xf32>
    %37 = vector.shape_cast %34 : vector<8x128xf32> to vector<1x8x128xf32>
    tpu.vector_store %arg6[%c0_11, %c0_12, %c0_13], %37 {strides = array<i32>} : memref<1x8x256xf32, #tpu.memory_space<vmem>>, vector<1x8x128xf32>,
    %38 = arith.addf %10, %30 : vector<8x128xf32>
    %39 = vector.broadcast %31 : vector<1x128xf32> to vector<8x128xf32>
    %40 = arith.addf %38, %39 : vector<8x128xf32>
    %c0_14 = arith.constant 0 : index
    %c0_15 = arith.constant 0 : index
    %c128 = arith.constant 128 : index
    %41 = vector.load %arg6[%c0_14, %c0_15, %c128] : memref<1x8x256xf32, #tpu.memory_space<vmem>>, vector<1x8x128xf32>
    %42 = vector.shape_cast %41 : vector<1x8x128xf32> to vector<8x128xf32>
    %43 = vector.shape_cast %40 : vector<8x128xf32> to vector<1x8x128xf32>
    tpu.vector_store %arg6[%c0_14, %c0_15, %c128], %43 {strides = array<i32>} : memref<1x8x256xf32, #tpu.memory_space<vmem>>, vector<1x8x128xf32>,
    return
  }
  func.func @transform_0(%arg0: i32, %arg1: i32) -> (i32, i32, i32) {
    %c0_i32 = arith.constant 0 : i32
    %c0_i32_0 = arith.constant 0 : i32
    return %arg0, %arg1, %c0_i32 : i32, i32, i32
  }
  func.func @transform_1(%arg0: i32, %arg1: i32) -> (i32, i32) {
    %c0_i32 = arith.constant 0 : i32
    %c0_i32_0 = arith.constant 0 : i32
    %c0_i32_1 = arith.constant 0 : i32
    return %c0_i32, %c0_i32_0 : i32, i32
  }
  func.func @transform_2(%arg0: i32, %arg1: i32) -> (i32, i32) {
    %c0_i32 = arith.constant 0 : i32
    %c0_i32_0 = arith.constant 0 : i32
    %c0_i32_1 = arith.constant 0 : i32
    return %c0_i32, %c0_i32_0 : i32, i32
  }
  func.func @transform_3(%arg0: i32, %arg1: i32) -> (i32, i32, i32, i32) {
    %c0_i32 = arith.constant 0 : i32
    %c0_i32_0 = arith.constant 0 : i32
    %c0_i32_1 = arith.constant 0 : i32
    %c0_i32_2 = arith.constant 0 : i32
    return %arg0, %c0_i32, %c0_i32_0, %c0_i32_1 : i32, i32, i32, i32
  }
  func.func @transform_4(%arg0: i32, %arg1: i32) -> (i32, i32, i32) {
    %c0_i32 = arith.constant 0 : i32
    %c0_i32_0 = arith.constant 0 : i32
    return %arg0, %arg1, %c0_i32 : i32, i32, i32
  }
}

module attributes {stable_mosaic.version = 11 : i64} {
  func.func @_upsample1d_kernel(%arg0: i32, %arg1: i32, %arg2: memref<1x8x128xf32, #tpu.memory_space<vmem>>, %arg3: memref<128x512xf32, #tpu.memory_space<vmem>>, %arg4: memref<1x128xf32, #tpu.memory_space<vmem>>, %arg5: memref<1x2x2x128xf32, #tpu.memory_space<vmem>>, %arg6: memref<1x8x256xf32, #tpu.memory_space<vmem>>) attributes {dimension_semantics = [#tpu.dimension_semantics<parallel>, #tpu.dimension_semantics<parallel>], iteration_bounds = array<i64: 2, 2>, scalar_prefetch = 0 : i64, scratch_operands = 0 : i64, tpu.core_type = #tpu.core_type<tc>, window_params = [{transform_indices = @transform_0, window_bounds = array<i64: 1, 8, 128>}, {pipeline_mode = #tpu.pipeline_mode<synchronous>, transform_indices = @transform_1, window_bounds = array<i64: 128, 512>}, {pipeline_mode = #tpu.pipeline_mode<synchronous>, transform_indices = @transform_2, window_bounds = array<i64: 1, 128>}, {transform_indices = @transform_3, window_bounds = array<i64: 1, 2, 2, 128>}, {transform_indices = @transform_4, window_bounds = array<i64: 1, 8, 256>}]} {
    %c0 = arith.constant 0 : index
    %c0_0 = arith.constant 0 : index
    %c0_1 = arith.constant 0 : index
    %0 = vector.load %arg2[%c0, %c0_0, %c0_1] : memref<1x8x128xf32, #tpu.memory_space<vmem>>, vector<1x8x128xf32>
    %1 = vector.shape_cast %0 : vector<1x8x128xf32> to vector<8x128xf32>
    %c0_2 = arith.constant 0 : index
    %c0_3 = arith.constant 0 : index
    %2 = vector.load %arg3[%c0_2, %c0_3] : memref<128x512xf32, #tpu.memory_space<vmem>>, vector<128x512xf32>
    %cst = arith.constant dense<0.000000e+00> : vector<8x512xf32>
    %3 = tpu.matmul %1, %2, %cst {dimension_numbers = #tpu.dot_dimension_numbers<[1], [0], [0], [1], [0, 0, 1, 1], [], []>} : vector<8x128xf32>, vector<128x512xf32>, vector<8x512xf32> -> vector<8x512xf32>
    %c0_4 = arith.constant 0 : index
    %4 = arith.index_cast %arg1 : i32 to index
    %c0_5 = arith.constant 0 : index
    %c0_6 = arith.constant 0 : index
    %5 = vector.load %arg5[%c0_4, %4, %c0_5, %c0_6] : memref<1x2x2x128xf32, #tpu.memory_space<vmem>>, vector<1x1x2x128xf32>
    %6 = vector.shape_cast %5 : vector<1x1x2x128xf32> to vector<2x128xf32>
    %cst_7 = arith.constant dense<0.000000e+00> : vector<2x512xf32>
    %7 = tpu.matmul %6, %2, %cst_7 {dimension_numbers = #tpu.dot_dimension_numbers<[1], [0], [0], [1], [0, 0, 1, 1], [], []>} : vector<2x128xf32>, vector<128x512xf32>, vector<2x512xf32> -> vector<2x512xf32>
    %8 = vector.extract_strided_slice %3 {offsets = [0, 0], sizes = [8, 128], strides = [1, 1]} : vector<8x512xf32> to vector<8x128xf32>
    %9 = vector.extract_strided_slice %3 {offsets = [0, 128], sizes = [8, 128], strides = [1, 1]} : vector<8x512xf32> to vector<8x128xf32>
    %10 = vector.extract_strided_slice %3 {offsets = [0, 256], sizes = [8, 128], strides = [1, 1]} : vector<8x512xf32> to vector<8x128xf32>
    %11 = vector.extract_strided_slice %3 {offsets = [0, 384], sizes = [8, 128], strides = [1, 1]} : vector<8x512xf32> to vector<8x128xf32>
    %12 = vector.extract_strided_slice %7 {offsets = [0, 384], sizes = [1, 128], strides = [1, 1]} : vector<2x512xf32> to vector<1x128xf32>
    %13 = vector.extract_strided_slice %7 {offsets = [1, 0], sizes = [1, 128], strides = [1, 1]} : vector<2x512xf32> to vector<1x128xf32>
    %14 = tpu.iota {dimensions = array<i32: 0>} : vector<8x1xi32>
    %c0_i32 = arith.constant 0 : i32
    %15 = vector.broadcast %c0_i32 : i32 to vector<8x1xi32>
    %16 = arith.cmpi eq, %14, %15 : vector<8x1xi32>
    %c1_i32 = arith.constant 1 : i32
    %17 = tpu.dynamic_rotate %11 by %c1_i32 dim 0 : vector<8x128xf32>, i32 -> vector<8x128xf32>
    %18 = vector.shape_cast %16 : vector<8x1xi1> to vector<8x1xi1>
    %19 = vector.broadcast %18 : vector<8x1xi1> to vector<8x128xi1>
    %20 = vector.shape_cast %12 : vector<1x128xf32> to vector<1x128xf32>
    %21 = vector.broadcast %20 : vector<1x128xf32> to vector<8x128xf32>
    %22 = arith.select %19, %21, %17 : vector<8x128xi1>, vector<8x128xf32>
    %c7_i32 = arith.constant 7 : i32
    %23 = vector.broadcast %c7_i32 : i32 to vector<8x1xi32>
    %24 = arith.cmpi eq, %14, %23 : vector<8x1xi32>
    %c7_i32_8 = arith.constant 7 : i32
    %25 = tpu.dynamic_rotate %8 by %c7_i32_8 dim 0 : vector<8x128xf32>, i32 -> vector<8x128xf32>
    %26 = vector.shape_cast %24 : vector<8x1xi1> to vector<8x1xi1>
    %27 = vector.broadcast %26 : vector<8x1xi1> to vector<8x128xi1>
    %28 = vector.shape_cast %13 : vector<1x128xf32> to vector<1x128xf32>
    %29 = vector.broadcast %28 : vector<1x128xf32> to vector<8x128xf32>
    %30 = arith.select %27, %29, %25 : vector<8x128xi1>, vector<8x128xf32>
    %c0_9 = arith.constant 0 : index
    %c0_10 = arith.constant 0 : index
    %31 = vector.load %arg4[%c0_9, %c0_10] : memref<1x128xf32, #tpu.memory_space<vmem>>, vector<1x128xf32>
    %32 = arith.addf %9, %22 : vector<8x128xf32>
    %33 = vector.broadcast %31 : vector<1x128xf32> to vector<8x128xf32>
    %34 = arith.addf %32, %33 : vector<8x128xf32>
    %c0_11 = arith.constant 0 : index
    %c0_12 = arith.constant 0 : index
    %c0_13 = arith.constant 0 : index
    %35 = vector.load %arg6[%c0_11, %c0_12, %c0_13] : memref<1x8x256xf32, #tpu.memory_space<vmem>>, vector<1x8x128xf32>
    %36 = vector.shape_cast %35 : vector<1x8x128xf32> to vector<8x128xf32>
    %37 = vector.shape_cast %34 : vector<8x128xf32> to vector<1x8x128xf32>
    tpu.vector_store %arg6[%c0_11, %c0_12, %c0_13], %37 {strides = array<i32>} : memref<1x8x256xf32, #tpu.memory_space<vmem>>, vector<1x8x128xf32>,
    %38 = arith.addf %10, %30 : vector<8x128xf32>
    %39 = vector.broadcast %31 : vector<1x128xf32> to vector<8x128xf32>
    %40 = arith.addf %38, %39 : vector<8x128xf32>
    %c0_14 = arith.constant 0 : index
    %c0_15 = arith.constant 0 : index
    %c128 = arith.constant 128 : index
    %41 = vector.load %arg6[%c0_14, %c0_15, %c128] : memref<1x8x256xf32, #tpu.memory_space<vmem>>, vector<1x8x128xf32>
    %42 = vector.shape_cast %41 : vector<1x8x128xf32> to vector<8x128xf32>
    %43 = vector.shape_cast %40 : vector<8x128xf32> to vector<1x8x128xf32>
    tpu.vector_store %arg6[%c0_14, %c0_15, %c128], %43 {strides = array<i32>} : memref<1x8x256xf32, #tpu.memory_space<vmem>>, vector<1x8x128xf32>,
    return
  }
  func.func @transform_0(%arg0: i32, %arg1: i32) -> (i32, i32, i32) {
    %c0_i32 = arith.constant 0 : i32
    %c0_i32_0 = arith.constant 0 : i32
    return %arg0, %arg1, %c0_i32 : i32, i32, i32
  }
  func.func @transform_1(%arg0: i32, %arg1: i32) -> (i32, i32) {
    %c0_i32 = arith.constant 0 : i32
    %c0_i32_0 = arith.constant 0 : i32
    %c0_i32_1 = arith.constant 0 : i32
    return %c0_i32, %c0_i32_0 : i32, i32
  }
  func.func @transform_2(%arg0: i32, %arg1: i32) -> (i32, i32) {
    %c0_i32 = arith.constant 0 : i32
    %c0_i32_0 = arith.constant 0 : i32
    %c0_i32_1 = arith.constant 0 : i32
    return %c0_i32, %c0_i32_0 : i32, i32
  }
  func.func @transform_3(%arg0: i32, %arg1: i32) -> (i32, i32, i32, i32) {
    %c0_i32 = arith.constant 0 : i32
    %c0_i32_0 = arith.constant 0 : i32
    %c0_i32_1 = arith.constant 0 : i32
    %c0_i32_2 = arith.constant 0 : i32
    return %arg0, %c0_i32, %c0_i32_0, %c0_i32_1 : i32, i32, i32, i32
  }
  func.func @transform_4(%arg0: i32, %arg1: i32) -> (i32, i32, i32) {
    %c0_i32 = arith.constant 0 : i32
    %c0_i32_0 = arith.constant 0 : i32
    return %arg0, %arg1, %c0_i32 : i32, i32, i32
  }
}

</mosaic_0001>

<llo_original>
// kernel: tpu_custom_call.1
$region0: #{tpu_custom_call.1}
  #allocation0 [shape = 'u32[]', space=smem, size = 0x4, offset = 0x4, fixed_abs, tag = 'smem constant byte address 0x4 - core index']
  #allocation1 [shape = 'u32[72,128]{1,0:T(1,128)}', space=vmem, size = 0x9000, scoped, tag = 'internal scratch']
  %s0 = inlined_call_operand.hbm [shape: f32[2,16,128], index: 0, kind: input, shape index: {}]
  %s1 = inlined_call_operand.hbm [shape: f32[128,512], index: 1, kind: input, shape index: {}]
  %s2 = inlined_call_operand.vmem [shape: f32[1,128], index: 2, kind: input, shape index: {}]
  %s3 = inlined_call_operand.hbm [shape: f32[2,2,2,128], index: 3, kind: input, shape index: {}]
  %s4 = inlined_call_operand.hbm [shape: f32[2,16,256], index: 4, kind: output, shape index: {}]
  %s5 = sld [smem:[#allocation0]]
  $region61: #{tpu_custom_call.1} parent=0
    _
  %s7 = ssub.s32 1, %s5
  %s8 = scalar_select 0, %s7, %s5
  $region1: #{tpu_custom_call.1} parent=0
    #allocation2 [shape = 'u8[8192]{0}', space=vmem, size = 0x2000, scoped, tag = 'input window, operand 0']
    #allocation3 [shape = 's32[2]{0}', space=sflag, size = 0x8, scoped, tag = 'scoped memory for tpu_custom_call.1']
    #allocation4 [shape = 's32[2]{0}', space=sflag, size = 0x8, scoped, tag = 'scoped memory for tpu_custom_call.1']
    #allocation5 [shape = 'u8[262144]{0}', space=vmem, size = 0x40000, scoped, tag = 'input window, operand 1, single buffered']
    #allocation6 [shape = 's32[1]{0}', space=sflag, size = 0x4, scoped, tag = 'scoped memory for tpu_custom_call.1']
    #allocation7 [shape = 'u8[4096]{0}', space=vmem, size = 0x1000, scoped, tag = 'input window, operand 3']
    #allocation8 [shape = 'u8[16384]{0}', space=vmem, size = 0x4000, scoped, tag = 'output window, operand 0']
    %9 = vsyncpa [#allocation3], 0
    %s10 = scalar_lea.sflag [#allocation3], 1
    %11 = vsyncpa %s10, 0
    %12 = vsyncpa [#allocation6], 0
    %13 = vsyncpa [#allocation4], 0
    %s14 = scalar_lea.sflag [#allocation4], 1
    %15 = vsyncpa %s14, 0
    loop: start=0, step=1, limit=6
    $region2: #{tpu_custom_call.1} parent=1 // loop_pre_header
      _
    $region3: #{tpu_custom_call.1} parent=1 // loop_header
      %s17 = sphi 0, %s21
      %p18 = scmp.ge.s32.totalorder %s17, 6
      %s24 = sphi 0, %s36
      %s25 = sphi 0, %s32
      %s26 = sphi 0, %s24
      %s27 = sphi 0, %s25
      %s28 = sphi 0, %s26
      %s29 = sphi 0, %s27
      %s41 = sphi 0, %s43
      %s44 = sphi 0, %s41
      %s45 = sphi 0, %s44
      %s61 = sphi 0, %s45
      %s65 = sphi 0, %s65
      %s67 = sphi 0, %s65
      %s68 = sphi 0, %s67
      %s82 = sphi 0, %s68
      %s86 = sphi 0, %s86
      %s88 = sphi 0, %s86
      %s89 = sphi 0, %s88
      %s103 = sphi 0, %s89
      %s109 = sphi 0, %s111
      %s112 = sphi 0, %s109
      %s113 = sphi 0, %s112
      %s129 = sphi 0, %s113
      %s137 = sphi 0, %s139
      %s140 = sphi 0, %s137
      %s141 = sphi 0, %s140
      %s157 = sphi 0, %s141
    $region4: #{tpu_custom_call.1} parent=1 // loop_header_branch
      %20 = sbr.rel (%p18) target = $region8
    $region5: #{tpu_custom_call.1} parent=1 // loop_body
      %s22 = ssub.s32 %s17, 1
      %s23 = ssub.s32 %s17, 2
      %s30 = sadd.s32 1, %s25
      %p31 = scmp.ge.s32.totalorder %s30, 2
      %s32 = scalar_select %p31, 0, %s30
      %s33 = sadd.s32 1, %s24
      %s34 = scalar_select %p31, %s33, %s24
      %p35 = scmp.ge.s32.totalorder %s34, 2
      %s36 = scalar_select %p35, 0, %s34
      %s37 = ssub.s32 %s24, %s36
      %s38 = ssub.s32 %s25, %s32
      %s39 = sor.u32 %s37, %s38
      %p40 = scmp.eq.s32.totalorder %s39, 0
      %s42 = sadd.s32 %s41, 1
      %s43 = scalar_select %p40, %s41, %s42
      %p46 = pneg %p40
      %p47 = scmp.eq.s32.totalorder %s17, 3
      %p48 = por %p46, %p47
      %p49 = scmp.ne.s32.totalorder %s41, %s44
      %p50 = scmp.eq.s32.totalorder %s17, 0
      %p51 = por %p49, %p50
      %p52 = scmp.ne.s32.totalorder %s41, %s44
      %p53 = scmp.eq.s32.totalorder %s22, 3
      %p54 = por %p52, %p53
      %p55 = scmp.ne.s32.totalorder %s44, %s45
      %p56 = scmp.eq.s32.totalorder %s22, 0
      %p57 = por %p55, %p56
      %p58 = scmp.ne.s32.totalorder %s44, %s45
      %p59 = scmp.eq.s32.totalorder %s23, 3
      %p60 = por %p58, %p59
      %p62 = scmp.ne.s32.totalorder %s45, %s61
      %p63 = scmp.eq.s32.totalorder %s23, 0
      %p64 = por %p62, %p63
      %s66 = sadd.s32 %s65, 1
      %p69 = scmp.eq.s32.totalorder %s17, 3
      %p70 = scmp.ne.s32.totalorder %s65, %s67
      %p71 = scmp.eq.s32.totalorder %s17, 0
      %p72 = por %p70, %p71
      %p73 = scmp.ne.s32.totalorder %s65, %s67
      %p74 = scmp.eq.s32.totalorder %s22, 3
      %p75 = por %p73, %p74
      %p76 = scmp.ne.s32.totalorder %s67, %s68
      %p77 = scmp.eq.s32.totalorder %s22, 0
      %p78 = por %p76, %p77
      %p79 = scmp.ne.s32.totalorder %s67, %s68
      %p80 = scmp.eq.s32.totalorder %s23, 3
      %p81 = por %p79, %p80
      %p83 = scmp.ne.s32.totalorder %s68, %s82
      %p84 = scmp.eq.s32.totalorder %s23, 0
      %p85 = por %p83, %p84
      %s87 = sadd.s32 %s86, 1
      %p90 = scmp.eq.s32.totalorder %s17, 3
      %p91 = scmp.ne.s32.totalorder %s86, %s88
      %p92 = scmp.eq.s32.totalorder %s17, 0
      %p93 = por %p91, %p92
      %p94 = scmp.ne.s32.totalorder %s86, %s88
      %p95 = scmp.eq.s32.totalorder %s22, 3
      %p96 = por %p94, %p95
      %p97 = scmp.ne.s32.totalorder %s88, %s89
      %p98 = scmp.eq.s32.totalorder %s22, 0
      %p99 = por %p97, %p98
      %p100 = scmp.ne.s32.totalorder %s88, %s89
      %p101 = scmp.eq.s32.totalorder %s23, 3
      %p102 = por %p100, %p101
      %p104 = scmp.ne.s32.totalorder %s89, %s103
      %p105 = scmp.eq.s32.totalorder %s23, 0
      %p106 = por %p104, %p105
      %s107 = ssub.s32 %s24, %s36
      %p108 = scmp.eq.s32.totalorder %s107, 0
      %s110 = sadd.s32 %s109, 1
      %s111 = scalar_select %p108, %s109, %s110
      %p114 = pneg %p108
      %p115 = scmp.eq.s32.totalorder %s17, 3
      %p116 = por %p114, %p115
      %p117 = scmp.ne.s32.totalorder %s109, %s112
      %p118 = scmp.eq.s32.totalorder %s17, 0
      %p119 = por %p117, %p118
      %p120 = scmp.ne.s32.totalorder %s109, %s112
      %p121 = scmp.eq.s32.totalorder %s22, 3
      %p122 = por %p120, %p121
      %p123 = scmp.ne.s32.totalorder %s112, %s113
      %p124 = scmp.eq.s32.totalorder %s22, 0
      %p125 = por %p123, %p124
      %p126 = scmp.ne.s32.totalorder %s112, %s113
      %p127 = scmp.eq.s32.totalorder %s23, 3
      %p128 = por %p126, %p127
      %p130 = scmp.ne.s32.totalorder %s113, %s129
      %p131 = scmp.eq.s32.totalorder %s23, 0
      %p132 = por %p130, %p131
      %s133 = ssub.s32 %s24, %s36
      %s134 = ssub.s32 %s25, %s32
      %s135 = sor.u32 %s133, %s134
      %p136 = scmp.eq.s32.totalorder %s135, 0
      %s138 = sadd.s32 %s137, 1
      %s139 = scalar_select %p136, %s137, %s138
      %p142 = pneg %p136
      %p143 = scmp.eq.s32.totalorder %s17, 3
      %p144 = por %p142, %p143
      %p145 = scmp.ne.s32.totalorder %s137, %s140
      %p146 = scmp.eq.s32.totalorder %s17, 0
      %p147 = por %p145, %p146
      %p148 = scmp.ne.s32.totalorder %s137, %s140
      %p149 = scmp.eq.s32.totalorder %s22, 3
      %p150 = por %p148, %p149
      %p151 = scmp.ne.s32.totalorder %s140, %s141
      %p152 = scmp.eq.s32.totalorder %s22, 0
      %p153 = por %p151, %p152
      %p154 = scmp.ne.s32.totalorder %s140, %s141
      %p155 = scmp.eq.s32.totalorder %s23, 3
      %p156 = por %p154, %p155
      %p158 = scmp.ne.s32.totalorder %s141, %s157
      %p159 = scmp.eq.s32.totalorder %s23, 0
      %p160 = por %p158, %p159
      %p161 = scmp.le.s32.totalorder 1, %s17
      %p162 = scmp.lt.s32.totalorder %s17, 5
      %p163 = pnand %p161, %p162
      %p164 = pneg %p163
      // Predicated region
      $region9: #{tpu_custom_call.1} parent=5 // pred_check
        _
      $region10: #{tpu_custom_call.1} parent=5 // pred_check_branch
        %166 = sbr.rel (%p163) target = $region12
      $region11: #{tpu_custom_call.1} parent=5 // pred_region
        %s167 = ssub.s32 %s17, 1
        // Predicated region
        $region13: #{tpu_custom_call.1} parent=11 // pred_check
          %p168 = pneg %p78
        $region14: #{tpu_custom_call.1} parent=11 // pred_check_branch
          %170 = sbr.rel (%p168) target = $region16
        $region15: #{tpu_custom_call.1} parent=11 // pred_region
          %172 = vsyncadd [#allocation6], 0
          %s173 = sshll.u32 %s1, 4
          %s174 = int_to_ptr.hbm [resolvable:$true] %s173
          %s175 = sshll.u32 [#allocation5], 4
          %s176 = int_to_ptr.vmem [resolvable:$true] %s175
          %181 = dma.hbm_to_vmem [thread:$0]  %s174, 8192, %s176, [#allocation6], 512, 512, 32
        $region16: #{tpu_custom_call.1} parent=11 // pred_fallthru
          _
        // Predicated region
        $region17: #{tpu_custom_call.1} parent=11 // pred_check
          %p182 = pneg %p99
        $region18: #{tpu_custom_call.1} parent=11 // pred_check_branch
          %184 = sbr.rel (%p182) target = $region20
        $region19: #{tpu_custom_call.1} parent=11 // pred_region
          _
        $region20: #{tpu_custom_call.1} parent=11 // pred_fallthru
          _
      $region12: #{tpu_custom_call.1} parent=5 // pred_fallthru
        _
      %p185 = scmp.lt.s32.totalorder %s17, 4
      // Predicated region
      $region21: #{tpu_custom_call.1} parent=5 // pred_check
        %p186 = pneg %p185
      $region22: #{tpu_custom_call.1} parent=5 // pred_check_branch
        %188 = sbr.rel (%p186) target = $region24
      $region23: #{tpu_custom_call.1} parent=5 // pred_region
        // Predicated region
        $region25: #{tpu_custom_call.1} parent=23 // pred_check
          %p189 = pneg %p51
        $region26: #{tpu_custom_call.1} parent=23 // pred_check_branch
          %191 = sbr.rel (%p189) target = $region28
        $region27: #{tpu_custom_call.1} parent=23 // pred_region
          %s192 = sand.u32 %s17, 1
          %s193 = scalar_lea.sflag [#allocation3], %s192
          %s194 = sand.u32 %s41, 1
          %s195 = smul.addr %s194, 8
          %s196 = scalar_lea.vmem [#allocation2], %s195
          %198 = vsyncadd %s193, 0
          %s199 = smul.addr %s24, 2
          %s200 = sadd.s32 %s25, %s199
          %s201 = smul.addr %s200, 8
          %s202 = scalar_lea.hbm %s0, %s201
          %s204 = sshll.u32 %s202, 4
          %s205 = int_to_ptr.hbm [resolvable:$true] %s204
          %s206 = sshll.u32 %s196, 4
          %s207 = int_to_ptr.vmem [resolvable:$true] %s206
          %209 = dma.hbm_to_vmem [thread:$0]  %s205, 128, %s207, %s193
        $region28: #{tpu_custom_call.1} parent=23 // pred_fallthru
          _
        // Predicated region
        $region29: #{tpu_custom_call.1} parent=23 // pred_check
          %p210 = pneg %p119
        $region30: #{tpu_custom_call.1} parent=23 // pred_check_branch
          %212 = sbr.rel (%p210) target = $region32
        $region31: #{tpu_custom_call.1} parent=23 // pred_region
          %s213 = sand.u32 %s17, 1
          %s214 = scalar_lea.sflag [#allocation3], %s213
          %s215 = sand.u32 %s109, 1
          %s216 = smul.addr %s215, 4
          %s217 = scalar_lea.vmem [#allocation7], %s216
          %219 = vsyncadd %s214, 0
          %s220 = smul.addr %s24, 2
          %s221 = smul.addr %s220, 2
          %s222 = scalar_lea.hbm %s3, %s221
          %s223 = sshll.u32 %s222, 4
          %s224 = int_to_ptr.hbm [resolvable:$true] %s223
          %s225 = sshll.u32 %s217, 4
          %s226 = int_to_ptr.vmem [resolvable:$true] %s225
          %231 = dma.hbm_to_vmem [thread:$0]  %s224, 64, %s226, %s214, 32, 32, 2
        $region32: #{tpu_custom_call.1} parent=23 // pred_fallthru
          _
      $region24: #{tpu_custom_call.1} parent=5 // pred_fallthru
        _
      %p232 = scmp.le.s32.totalorder 1, %s17
      %p233 = scmp.lt.s32.totalorder %s17, 5
      %p234 = pnand %p232, %p233
      %p235 = pneg %p234
      // Predicated region
      $region33: #{tpu_custom_call.1} parent=5 // pred_check
        _
      $region34: #{tpu_custom_call.1} parent=5 // pred_check_branch
        %237 = sbr.rel (%p234) target = $region36
      $region35: #{tpu_custom_call.1} parent=5 // pred_region
        %s238 = ssub.s32 %s17, 1
        %s239 = sand.u32 %s22, 1
        %s240 = scalar_lea.sflag [#allocation3], %s239
        %s241 = sand.u32 %s44, 1
        %s242 = smul.addr %s241, 8
        %s243 = scalar_lea.vmem [#allocation2], %s242
        // Predicated region
        $region37: #{tpu_custom_call.1} parent=35 // pred_check
          %p244 = pneg %p57
        $region38: #{tpu_custom_call.1} parent=35 // pred_check_branch
          %246 = sbr.rel (%p244) target = $region40
        $region39: #{tpu_custom_call.1} parent=35 // pred_region
          %248 = dma.done %s240, 128
        $region40: #{tpu_custom_call.1} parent=35 // pred_fallthru
          _
        // Predicated region
        $region41: #{tpu_custom_call.1} parent=35 // pred_check
          %p249 = pneg %p78
        $region42: #{tpu_custom_call.1} parent=35 // pred_check_branch
          %251 = sbr.rel (%p249) target = $region44
        $region43: #{tpu_custom_call.1} parent=35 // pred_region
          %253 = dma.done [#allocation6], 8192
        $region44: #{tpu_custom_call.1} parent=35 // pred_fallthru
          _
        %s254 = sand.u32 %s22, 1
        %s255 = scalar_lea.sflag [#allocation3], %s254
        %s256 = sand.u32 %s112, 1
        %s257 = smul.addr %s256, 4
        %s258 = scalar_lea.vmem [#allocation7], %s257
        // Predicated region
        $region45: #{tpu_custom_call.1} parent=35 // pred_check
          %p259 = pneg %p125
        $region46: #{tpu_custom_call.1} parent=35 // pred_check_branch
          %261 = sbr.rel (%p259) target = $region48
        $region47: #{tpu_custom_call.1} parent=35 // pred_region
          %263 = dma.done %s255, 64
        $region48: #{tpu_custom_call.1} parent=35 // pred_fallthru
          _
        %s264 = sand.u32 %s22, 1
        %s265 = scalar_lea.sflag [#allocation3], %s264
        %s266 = sand.u32 %s44, 1
        %s267 = smul.addr %s266, 8
        %s268 = scalar_lea.vmem [#allocation2], %s267
        %p269 = pneg %p57
        %p270 = pneg %p54
        %p271 = pneg %p78
        %p272 = pneg %p75
        %p273 = pneg %p99
        %p274 = pneg %p96
        %s275 = sand.u32 %s22, 1
        %s276 = scalar_lea.sflag [#allocation3], %s275
        %s277 = sand.u32 %s112, 1
        %s278 = smul.addr %s277, 4
        %s279 = scalar_lea.vmem [#allocation7], %s278
        %p280 = pneg %p125
        %p281 = pneg %p122
        %p282 = pneg %p153
        %p283 = pneg %p150
        %s284 = sand.u32 %s140, 1
        %s285 = scalar_lea.sflag [#allocation4], %s284
        %s286 = sand.u32 %s140, 1
        %s287 = smul.addr %s286, 16
        %s288 = scalar_lea.vmem [#allocation8], %s287
        %v289 = vld [vmem:[%s243] sm:$0xff]
        %v290 = vld [vmem:[#allocation5] sm:$0xff]
        %v291 = vld [vmem:[#allocation5 + $0x8] sm:$0xff]
        %v292 = vld [vmem:[#allocation5 + $0x10] sm:$0xff]
        %v293 = vld [vmem:[#allocation5 + $0x18] sm:$0xff]
        %v294 = vld [vmem:[#allocation5 + $0x20] sm:$0xff]
        %v295 = vld [vmem:[#allocation5 + $0x28] sm:$0xff]
        %v296 = vld [vmem:[#allocation5 + $0x30] sm:$0xff]
        %v297 = vld [vmem:[#allocation5 + $0x38] sm:$0xff]
        %v298 = vld [vmem:[#allocation5 + $0x40] sm:$0xff]
        %v299 = vld [vmem:[#allocation5 + $0x48] sm:$0xff]
        %v300 = vld [vmem:[#allocation5 + $0x50] sm:$0xff]
        %v301 = vld [vmem:[#allocation5 + $0x58] sm:$0xff]
        %v302 = vld [vmem:[#allocation5 + $0x60] sm:$0xff]
        %v303 = vld [vmem:[#allocation5 + $0x68] sm:$0xff]
        %v304 = vld [vmem:[#allocation5 + $0x70] sm:$0xff]
        %v305 = vld [vmem:[#allocation5 + $0x78] sm:$0xff]
        %v306 = vld [vmem:[#allocation5 + $0x80] sm:$0xff]
        %v307 = vld [vmem:[#allocation5 + $0x88] sm:$0xff]
        %v308 = vld [vmem:[#allocation5 + $0x90] sm:$0xff]
        %v309 = vld [vmem:[#allocation5 + $0x98] sm:$0xff]
        %v310 = vld [vmem:[#allocation5 + $0xa0] sm:$0xff]
        %v311 = vld [vmem:[#allocation5 + $0xa8] sm:$0xff]
        %v312 = vld [vmem:[#allocation5 + $0xb0] sm:$0xff]
        %v313 = vld [vmem:[#allocation5 + $0xb8] sm:$0xff]
        %v314 = vld [vmem:[#allocation5 + $0xc0] sm:$0xff]
        %v315 = vld [vmem:[#allocation5 + $0xc8] sm:$0xff]
        %v316 = vld [vmem:[#allocation5 + $0xd0] sm:$0xff]
        %v317 = vld [vmem:[#allocation5 + $0xd8] sm:$0xff]
        %v318 = vld [vmem:[#allocation5 + $0xe0] sm:$0xff]
        %v319 = vld [vmem:[#allocation5 + $0xe8] sm:$0xff]
        %v320 = vld [vmem:[#allocation5 + $0xf0] sm:$0xff]
        %v321 = vld [vmem:[#allocation5 + $0xf8] sm:$0xff]
        %v322 = vld [vmem:[#allocation5 + $0x100] sm:$0xff]
        %v323 = vld [vmem:[#allocation5 + $0x108] sm:$0xff]
        %v324 = vld [vmem:[#allocation5 + $0x110] sm:$0xff]
        %v325 = vld [vmem:[#allocation5 + $0x118] sm:$0xff]
        %v326 = vld [vmem:[#allocation5 + $0x120] sm:$0xff]
        %v327 = vld [vmem:[#allocation5 + $0x128] sm:$0xff]
        %v328 = vld [vmem:[#allocation5 + $0x130] sm:$0xff]
        %v329 = vld [vmem:[#allocation5 + $0x138] sm:$0xff]
        %v330 = vld [vmem:[#allocation5 + $0x140] sm:$0xff]
        %v331 = vld [vmem:[#allocation5 + $0x148] sm:$0xff]
        %v332 = vld [vmem:[#allocation5 + $0x150] sm:$0xff]
        %v333 = vld [vmem:[#allocation5 + $0x158] sm:$0xff]
        %v334 = vld [vmem:[#allocation5 + $0x160] sm:$0xff]
        %v335 = vld [vmem:[#allocation5 + $0x168] sm:$0xff]
        %v336 = vld [vmem:[#allocation5 + $0x170] sm:$0xff]
        %v337 = vld [vmem:[#allocation5 + $0x178] sm:$0xff]
        %v338 = vld [vmem:[#allocation5 + $0x180] sm:$0xff]
        %v339 = vld [vmem:[#allocation5 + $0x188] sm:$0xff]
        %v340 = vld [vmem:[#allocation5 + $0x190] sm:$0xff]
        %v341 = vld [vmem:[#allocation5 + $0x198] sm:$0xff]
        %v342 = vld [vmem:[#allocation5 + $0x1a0] sm:$0xff]
        %v343 = vld [vmem:[#allocation5 + $0x1a8] sm:$0xff]
        %v344 = vld [vmem:[#allocation5 + $0x1b0] sm:$0xff]
        %v345 = vld [vmem:[#allocation5 + $0x1b8] sm:$0xff]
        %v346 = vld [vmem:[#allocation5 + $0x1c0] sm:$0xff]
        %v347 = vld [vmem:[#allocation5 + $0x1c8] sm:$0xff]
        %v348 = vld [vmem:[#allocation5 + $0x1d0] sm:$0xff]
        %v349 = vld [vmem:[#allocation5 + $0x1d8] sm:$0xff]
        %v350 = vld [vmem:[#allocation5 + $0x1e0] sm:$0xff]
        %v351 = vld [vmem:[#allocation5 + $0x1e8] sm:$0xff]
        %v352 = vld [vmem:[#allocation5 + $0x1f0] sm:$0xff]
        %v353 = vld [vmem:[#allocation5 + $0x1f8] sm:$0xff]
        %354 = vmatpush.msra.mxu0 %v350
        %355 = vmatpush.msra.mxu0 %v346
        %356 = vmatpush.msra.mxu0 %v342
        %357 = vmatpush.msra.mxu0 %v338
        %358 = vmatpush.msra.mxu0 %v334
        %359 = vmatpush.msra.mxu0 %v330
        %360 = vmatpush.msra.mxu0 %v326
        %361 = vmatpush.msra.mxu0 %v322
        %362 = vmatpush.msra.mxu0 %v318
        %363 = vmatpush.msra.mxu0 %v314
        %364 = vmatpush.msra.mxu0 %v310
        %365 = vmatpush.msra.mxu0 %v306
        %366 = vmatpush.msra.mxu0 %v302
        %367 = vmatpush.msra.mxu0 %v298
        %368 = vmatpush.msra.mxu0 %v294
        %369 = vmatpush.msra.mxu0 %v290
        %370 = vmatmul.f32.gmra.mxu0 %v289
        %v371 = vpop.f32.mrf.mxu0
        %v372 = vadd.f32 0.0, %v371
        %373 = vdwg.mxu0
        %374 = vmatpush.msra.mxu0 %v351
        %375 = vmatpush.msra.mxu0 %v347
        %376 = vmatpush.msra.mxu0 %v343
        %377 = vmatpush.msra.mxu0 %v339
        %378 = vmatpush.msra.mxu0 %v335
        %379 = vmatpush.msra.mxu0 %v331
        %380 = vmatpush.msra.mxu0 %v327
        %381 = vmatpush.msra.mxu0 %v323
        %382 = vmatpush.msra.mxu0 %v319
        %383 = vmatpush.msra.mxu0 %v315
        %384 = vmatpush.msra.mxu0 %v311
        %385 = vmatpush.msra.mxu0 %v307
        %386 = vmatpush.msra.mxu0 %v303
        %387 = vmatpush.msra.mxu0 %v299
        %388 = vmatpush.msra.mxu0 %v295
        %389 = vmatpush.msra.mxu0 %v291
        %390 = vmatmul.f32.gmra.mxu0 %v289
        %v391 = vpop.f32.mrf.mxu0
        %v392 = vadd.f32 0.0, %v391
        %393 = vdwg.mxu0
        %394 = vmatpush.msra.mxu0 %v352
        %395 = vmatpush.msra.mxu0 %v348
        %396 = vmatpush.msra.mxu0 %v344
        %397 = vmatpush.msra.mxu0 %v340
        %398 = vmatpush.msra.mxu0 %v336
        %399 = vmatpush.msra.mxu0 %v332
        %400 = vmatpush.msra.mxu0 %v328
        %401 = vmatpush.msra.mxu0 %v324
        %402 = vmatpush.msra.mxu0 %v320
        %403 = vmatpush.msra.mxu0 %v316
        %404 = vmatpush.msra.mxu0 %v312
        %405 = vmatpush.msra.mxu0 %v308
        %406 = vmatpush.msra.mxu0 %v304
        %407 = vmatpush.msra.mxu0 %v300
        %408 = vmatpush.msra.mxu0 %v296
        %409 = vmatpush.msra.mxu0 %v292
        %410 = vmatmul.f32.gmra.mxu0 %v289
        %v411 = vpop.f32.mrf.mxu0
        %v412 = vadd.f32 0.0, %v411
        %413 = vdwg.mxu0
        %414 = vmatpush.msra.mxu0 %v353
        %415 = vmatpush.msra.mxu0 %v349
        %416 = vmatpush.msra.mxu0 %v345
        %417 = vmatpush.msra.mxu0 %v341
        %418 = vmatpush.msra.mxu0 %v337
        %419 = vmatpush.msra.mxu0 %v333
        %420 = vmatpush.msra.mxu0 %v329
        %421 = vmatpush.msra.mxu0 %v325
        %422 = vmatpush.msra.mxu0 %v321
        %423 = vmatpush.msra.mxu0 %v317
        %424 = vmatpush.msra.mxu0 %v313
        %425 = vmatpush.msra.mxu0 %v309
        %426 = vmatpush.msra.mxu0 %v305
        %427 = vmatpush.msra.mxu0 %v301
        %428 = vmatpush.msra.mxu0 %v297
        %429 = vmatpush.msra.mxu0 %v293
        %430 = vmatmul.f32.gmra.mxu0 %v289
        %v431 = vpop.f32.mrf.mxu0
        %v432 = vadd.f32 0.0, %v431
        %433 = vdwg.mxu0
        %s434 = smul.u32 %s27, 2
        %s435 = scalar_lea.vmem %s258, %s434 [#allocation7]
        %v436 = vld [vmem:[%s435] sm:$0x3]
        %437 = vmatpush.msra.mxu0 %v350
        %438 = vmatpush.msra.mxu0 %v346
        %439 = vmatpush.msra.mxu0 %v342
        %440 = vmatpush.msra.mxu0 %v338
        %441 = vmatpush.msra.mxu0 %v334
        %442 = vmatpush.msra.mxu0 %v330
        %443 = vmatpush.msra.mxu0 %v326
        %444 = vmatpush.msra.mxu0 %v322
        %445 = vmatpush.msra.mxu0 %v318
        %446 = vmatpush.msra.mxu0 %v314
        %447 = vmatpush.msra.mxu0 %v310
        %448 = vmatpush.msra.mxu0 %v306
        %449 = vmatpush.msra.mxu0 %v302
        %450 = vmatpush.msra.mxu0 %v298
        %451 = vmatpush.msra.mxu0 %v294
        %452 = vmatpush.msra.mxu0 %v290
        %453 = vmatmul.f32.gmra.mxu0 %v436
        %v454 = vpop.f32.mrf.mxu0
        %v455 = vadd.f32 0.0, %v454
        %456 = vdwg.mxu0
        %457 = vmatpush.msra.mxu0 %v353
        %458 = vmatpush.msra.mxu0 %v349
        %459 = vmatpush.msra.mxu0 %v345
        %460 = vmatpush.msra.mxu0 %v341
        %461 = vmatpush.msra.mxu0 %v337
        %462 = vmatpush.msra.mxu0 %v333
        %463 = vmatpush.msra.mxu0 %v329
        %464 = vmatpush.msra.mxu0 %v325
        %465 = vmatpush.msra.mxu0 %v321
        %466 = vmatpush.msra.mxu0 %v317
        %467 = vmatpush.msra.mxu0 %v313
        %468 = vmatpush.msra.mxu0 %v309
        %469 = vmatpush.msra.mxu0 %v305
        %470 = vmatpush.msra.mxu0 %v301
        %471 = vmatpush.msra.mxu0 %v297
        %472 = vmatpush.msra.mxu0 %v293
        %473 = vmatmul.f32.gmra.mxu0 %v436
        %v474 = vpop.f32.mrf.mxu0
        %v475 = vadd.f32 0.0, %v474
        %476 = vdwg.mxu0
        %v477 = vlaneseq
        %v478 = vshrl.u32 %v477, 7
        %vm479 = vcmp.eq.s32.totalorder %v478, 0
        %v480 = vrot.slane %v432, 7
        %v481 = vsel %vm479, 1, 0
        %vm482 = vcmp.eq.s32.totalorder %v481, 1
        %v483 = vperm.slane %v475, 0
        %v484 = vsel %vm482, %v483, %v480
        %vm485 = vcmp.eq.s32.totalorder %v478, 7
        %v486 = vrot.slane %v372, 1
        %v487 = vsel %vm485, 1, 0
        %vm488 = vcmp.eq.s32.totalorder %v487, 1
        %v489 = vperm.slane %v455, 1
        %v490 = vsel %vm488, %v489, %v486
        %v491 = vld [vmem:[%s2] sm:$0x1]
        %v492 = vadd.f32 %v392, %v484
        %v494 = vperm.slane %v491, 0
        %v496 = vadd.f32 %v492, %v494
        %497 = vst [vmem:[%s288] sm:$0xff] %v496
        %v498 = vadd.f32 %v412, %v490
        %v499 = vadd.f32 %v498, %v494
        %500 = vst [vmem:[%s288 + $0x8] sm:$0xff] %v499
        %s501 = sand.u32 %s140, 1
        %s502 = scalar_lea.sflag [#allocation4], %s501
        %s503 = sand.u32 %s140, 1
        %s504 = smul.addr %s503, 16
        %s505 = scalar_lea.vmem [#allocation8], %s504
        // Predicated region
        $region49: #{tpu_custom_call.1} parent=35 // pred_check
          %p506 = pneg %p150
        $region50: #{tpu_custom_call.1} parent=35 // pred_check_branch
          %508 = sbr.rel (%p506) target = $region52
        $region51: #{tpu_custom_call.1} parent=35 // pred_region
          %510 = vsyncadd %s502, 0
          %s511 = smul.addr %s27, 2
          %s512 = smul.addr %s26, 4
          %s513 = sadd.s32 %s511, %s512
          %s514 = smul.addr %s513, 8
          %s515 = scalar_lea.hbm %s4, %s514
          %s517 = sshll.u32 %s505, 4
          %s518 = int_to_ptr.vmem [resolvable:$true] %s517
          %s519 = sshll.u32 %s515, 4
          %s520 = int_to_ptr.hbm [resolvable:$true] %s519
          %522 = dma.vmem_to_hbm [thread:$0]  %s518, 256, %s520, %s502
        $region52: #{tpu_custom_call.1} parent=35 // pred_fallthru
          _
      $region36: #{tpu_custom_call.1} parent=5 // pred_fallthru
        _
      %p523 = scmp.le.s32.totalorder 2, %s17
      // Predicated region
      $region53: #{tpu_custom_call.1} parent=5 // pred_check
        %p524 = pneg %p523
      $region54: #{tpu_custom_call.1} parent=5 // pred_check_branch
        %526 = sbr.rel (%p524) target = $region56
      $region55: #{tpu_custom_call.1} parent=5 // pred_region
        %s527 = ssub.s32 %s17, 2
        // Predicated region
        $region57: #{tpu_custom_call.1} parent=55 // pred_check
          %p528 = pneg %p156
        $region58: #{tpu_custom_call.1} parent=55 // pred_check_branch
          %530 = sbr.rel (%p528) target = $region60
        $region59: #{tpu_custom_call.1} parent=55 // pred_region
          %s531 = sand.u32 %s141, 1
          %s532 = scalar_lea.sflag [#allocation4], %s531
          %s533 = sand.u32 %s141, 1
          %s534 = smul.addr %s533, 16
          %s535 = scalar_lea.vmem [#allocation8], %s534
          %537 = dma.done %s532, 256
        $region60: #{tpu_custom_call.1} parent=55 // pred_fallthru
          _
      $region56: #{tpu_custom_call.1} parent=5 // pred_fallthru
        _
    $region6: #{tpu_custom_call.1} parent=1 // loop_footer
      %s21 = sadd.s32 1, %s17
    $region7: #{tpu_custom_call.1} parent=1 // loop_footer_branch
      %16 = sbr.rel target = $region3
    $region8: #{tpu_custom_call.1} parent=1 // loop_exit
      _
    %538 = vsyncpa [#allocation3], 1
    %s539 = scalar_lea.sflag [#allocation3], 1
    %540 = vsyncpa %s539, 1
    %541 = vsyncpa [#allocation6], 1
    %542 = vsyncpa [#allocation4], 1
    %s543 = scalar_lea.sflag [#allocation4], 1
    %544 = vsyncpa %s543, 1

// kernel: tpu_custom_call.1
$region0: #{tpu_custom_call.1}
  #allocation0 [shape = 'u32[]', space=smem, size = 0x4, offset = 0x4, fixed_abs, tag = 'smem constant byte address 0x4 - core index']
  #allocation1 [shape = 'u32[72,128]{1,0:T(1,128)}', space=vmem, size = 0x9000, scoped, tag = 'internal scratch']
  %s0 = inlined_call_operand.hbm [shape: f32[2,16,128], index: 0, kind: input, shape index: {}]
  %s1 = inlined_call_operand.hbm [shape: f32[128,512], index: 1, kind: input, shape index: {}]
  %s2 = inlined_call_operand.vmem [shape: f32[1,128], index: 2, kind: input, shape index: {}]
  %s3 = inlined_call_operand.hbm [shape: f32[2,2,2,128], index: 3, kind: input, shape index: {}]
  %s4 = inlined_call_operand.hbm [shape: f32[2,16,256], index: 4, kind: output, shape index: {}]
  %s5 = sld [smem:[#allocation0]]
  $region61: #{tpu_custom_call.1} parent=0
    _
  %s7 = ssub.s32 1, %s5
  %s8 = scalar_select 0, %s7, %s5
  $region1: #{tpu_custom_call.1} parent=0
    #allocation2 [shape = 'u8[8192]{0}', space=vmem, size = 0x2000, scoped, tag = 'input window, operand 0']
    #allocation3 [shape = 's32[2]{0}', space=sflag, size = 0x8, scoped, tag = 'scoped memory for tpu_custom_call.1']
    #allocation4 [shape = 's32[2]{0}', space=sflag, size = 0x8, scoped, tag = 'scoped memory for tpu_custom_call.1']
    #allocation5 [shape = 'u8[262144]{0}', space=vmem, size = 0x40000, scoped, tag = 'input window, operand 1, single buffered']
    #allocation6 [shape = 's32[1]{0}', space=sflag, size = 0x4, scoped, tag = 'scoped memory for tpu_custom_call.1']
    #allocation7 [shape = 'u8[4096]{0}', space=vmem, size = 0x1000, scoped, tag = 'input window, operand 3']
    #allocation8 [shape = 'u8[16384]{0}', space=vmem, size = 0x4000, scoped, tag = 'output window, operand 0']
    %9 = vsyncpa [#allocation3], 0
    %s10 = scalar_lea.sflag [#allocation3], 1
    %11 = vsyncpa %s10, 0
    %12 = vsyncpa [#allocation6], 0
    %13 = vsyncpa [#allocation4], 0
    %s14 = scalar_lea.sflag [#allocation4], 1
    %15 = vsyncpa %s14, 0
    loop: start=0, step=1, limit=6
    $region2: #{tpu_custom_call.1} parent=1 // loop_pre_header
      _
    $region3: #{tpu_custom_call.1} parent=1 // loop_header
      %s17 = sphi 0, %s21
      %p18 = scmp.ge.s32.totalorder %s17, 6
      %s24 = sphi 0, %s36
      %s25 = sphi 0, %s32
      %s26 = sphi 0, %s24
      %s27 = sphi 0, %s25
      %s28 = sphi 0, %s26
      %s29 = sphi 0, %s27
      %s41 = sphi 0, %s43
      %s44 = sphi 0, %s41
      %s45 = sphi 0, %s44
      %s61 = sphi 0, %s45
      %s65 = sphi 0, %s65
      %s67 = sphi 0, %s65
      %s68 = sphi 0, %s67
      %s82 = sphi 0, %s68
      %s86 = sphi 0, %s86
      %s88 = sphi 0, %s86
      %s89 = sphi 0, %s88
      %s103 = sphi 0, %s89
      %s109 = sphi 0, %s111
      %s112 = sphi 0, %s109
      %s113 = sphi 0, %s112
      %s129 = sphi 0, %s113
      %s137 = sphi 0, %s139
      %s140 = sphi 0, %s137
      %s141 = sphi 0, %s140
      %s157 = sphi 0, %s141
    $region4: #{tpu_custom_call.1} parent=1 // loop_header_branch
      %20 = sbr.rel (%p18) target = $region8
    $region5: #{tpu_custom_call.1} parent=1 // loop_body
      %s22 = ssub.s32 %s17, 1
      %s23 = ssub.s32 %s17, 2
      %s30 = sadd.s32 1, %s25
      %p31 = scmp.ge.s32.totalorder %s30, 2
      %s32 = scalar_select %p31, 0, %s30
      %s33 = sadd.s32 1, %s24
      %s34 = scalar_select %p31, %s33, %s24
      %p35 = scmp.ge.s32.totalorder %s34, 2
      %s36 = scalar_select %p35, 0, %s34
      %s37 = ssub.s32 %s24, %s36
      %s38 = ssub.s32 %s25, %s32
      %s39 = sor.u32 %s37, %s38
      %p40 = scmp.eq.s32.totalorder %s39, 0
      %s42 = sadd.s32 %s41, 1
      %s43 = scalar_select %p40, %s41, %s42
      %p46 = pneg %p40
      %p47 = scmp.eq.s32.totalorder %s17, 3
      %p48 = por %p46, %p47
      %p49 = scmp.ne.s32.totalorder %s41, %s44
      %p50 = scmp.eq.s32.totalorder %s17, 0
      %p51 = por %p49, %p50
      %p52 = scmp.ne.s32.totalorder %s41, %s44
      %p53 = scmp.eq.s32.totalorder %s22, 3
      %p54 = por %p52, %p53
      %p55 = scmp.ne.s32.totalorder %s44, %s45
      %p56 = scmp.eq.s32.totalorder %s22, 0
      %p57 = por %p55, %p56
      %p58 = scmp.ne.s32.totalorder %s44, %s45
      %p59 = scmp.eq.s32.totalorder %s23, 3
      %p60 = por %p58, %p59
      %p62 = scmp.ne.s32.totalorder %s45, %s61
      %p63 = scmp.eq.s32.totalorder %s23, 0
      %p64 = por %p62, %p63
      %s66 = sadd.s32 %s65, 1
      %p69 = scmp.eq.s32.totalorder %s17, 3
      %p70 = scmp.ne.s32.totalorder %s65, %s67
      %p71 = scmp.eq.s32.totalorder %s17, 0
      %p72 = por %p70, %p71
      %p73 = scmp.ne.s32.totalorder %s65, %s67
      %p74 = scmp.eq.s32.totalorder %s22, 3
      %p75 = por %p73, %p74
      %p76 = scmp.ne.s32.totalorder %s67, %s68
      %p77 = scmp.eq.s32.totalorder %s22, 0
      %p78 = por %p76, %p77
      %p79 = scmp.ne.s32.totalorder %s67, %s68
      %p80 = scmp.eq.s32.totalorder %s23, 3
      %p81 = por %p79, %p80
      %p83 = scmp.ne.s32.totalorder %s68, %s82
      %p84 = scmp.eq.s32.totalorder %s23, 0
      %p85 = por %p83, %p84
      %s87 = sadd.s32 %s86, 1
      %p90 = scmp.eq.s32.totalorder %s17, 3
      %p91 = scmp.ne.s32.totalorder %s86, %s88
      %p92 = scmp.eq.s32.totalorder %s17, 0
      %p93 = por %p91, %p92
      %p94 = scmp.ne.s32.totalorder %s86, %s88
      %p95 = scmp.eq.s32.totalorder %s22, 3
      %p96 = por %p94, %p95
      %p97 = scmp.ne.s32.totalorder %s88, %s89
      %p98 = scmp.eq.s32.totalorder %s22, 0
      %p99 = por %p97, %p98
      %p100 = scmp.ne.s32.totalorder %s88, %s89
      %p101 = scmp.eq.s32.totalorder %s23, 3
      %p102 = por %p100, %p101
      %p104 = scmp.ne.s32.totalorder %s89, %s103
      %p105 = scmp.eq.s32.totalorder %s23, 0
      %p106 = por %p104, %p105
      %s107 = ssub.s32 %s24, %s36
      %p108 = scmp.eq.s32.totalorder %s107, 0
      %s110 = sadd.s32 %s109, 1
      %s111 = scalar_select %p108, %s109, %s110
      %p114 = pneg %p108
      %p115 = scmp.eq.s32.totalorder %s17, 3
      %p116 = por %p114, %p115
      %p117 = scmp.ne.s32.totalorder %s109, %s112
      %p118 = scmp.eq.s32.totalorder %s17, 0
      %p119 = por %p117, %p118
      %p120 = scmp.ne.s32.totalorder %s109, %s112
      %p121 = scmp.eq.s32.totalorder %s22, 3
      %p122 = por %p120, %p121
      %p123 = scmp.ne.s32.totalorder %s112, %s113
      %p124 = scmp.eq.s32.totalorder %s22, 0
      %p125 = por %p123, %p124
      %p126 = scmp.ne.s32.totalorder %s112, %s113
      %p127 = scmp.eq.s32.totalorder %s23, 3
      %p128 = por %p126, %p127
      %p130 = scmp.ne.s32.totalorder %s113, %s129
      %p131 = scmp.eq.s32.totalorder %s23, 0
      %p132 = por %p130, %p131
      %s133 = ssub.s32 %s24, %s36
      %s134 = ssub.s32 %s25, %s32
      %s135 = sor.u32 %s133, %s134
      %p136 = scmp.eq.s32.totalorder %s135, 0
      %s138 = sadd.s32 %s137, 1
      %s139 = scalar_select %p136, %s137, %s138
      %p142 = pneg %p136
      %p143 = scmp.eq.s32.totalorder %s17, 3
      %p144 = por %p142, %p143
      %p145 = scmp.ne.s32.totalorder %s137, %s140
      %p146 = scmp.eq.s32.totalorder %s17, 0
      %p147 = por %p145, %p146
      %p148 = scmp.ne.s32.totalorder %s137, %s140
      %p149 = scmp.eq.s32.totalorder %s22, 3
      %p150 = por %p148, %p149
      %p151 = scmp.ne.s32.totalorder %s140, %s141
      %p152 = scmp.eq.s32.totalorder %s22, 0
      %p153 = por %p151, %p152
      %p154 = scmp.ne.s32.totalorder %s140, %s141
      %p155 = scmp.eq.s32.totalorder %s23, 3
      %p156 = por %p154, %p155
      %p158 = scmp.ne.s32.totalorder %s141, %s157
      %p159 = scmp.eq.s32.totalorder %s23, 0
      %p160 = por %p158, %p159
      %p161 = scmp.le.s32.totalorder 1, %s17
      %p162 = scmp.lt.s32.totalorder %s17, 5
      %p163 = pnand %p161, %p162
      %p164 = pneg %p163
      // Predicated region
      $region9: #{tpu_custom_call.1} parent=5 // pred_check
        _
      $region10: #{tpu_custom_call.1} parent=5 // pred_check_branch
        %166 = sbr.rel (%p163) target = $region12
      $region11: #{tpu_custom_call.1} parent=5 // pred_region
        %s167 = ssub.s32 %s17, 1
        // Predicated region
        $region13: #{tpu_custom_call.1} parent=11 // pred_check
          %p168 = pneg %p78
        $region14: #{tpu_custom_call.1} parent=11 // pred_check_branch
          %170 = sbr.rel (%p168) target = $region16
        $region15: #{tpu_custom_call.1} parent=11 // pred_region
          %172 = vsyncadd [#allocation6], 0
          %s173 = sshll.u32 %s1, 4
          %s174 = int_to_ptr.hbm [resolvable:$true] %s173
          %s175 = sshll.u32 [#allocation5], 4
          %s176 = int_to_ptr.vmem [resolvable:$true] %s175
          %181 = dma.hbm_to_vmem [thread:$0]  %s174, 8192, %s176, [#allocation6], 512, 512, 32
        $region16: #{tpu_custom_call.1} parent=11 // pred_fallthru
          _
        // Predicated region
        $region17: #{tpu_custom_call.1} parent=11 // pred_check
          %p182 = pneg %p99
        $region18: #{tpu_custom_call.1} parent=11 // pred_check_branch
          %184 = sbr.rel (%p182) target = $region20
        $region19: #{tpu_custom_call.1} parent=11 // pred_region
          _
        $region20: #{tpu_custom_call.1} parent=11 // pred_fallthru
          _
      $region12: #{tpu_custom_call.1} parent=5 // pred_fallthru
        _
      %p185 = scmp.lt.s32.totalorder %s17, 4
      // Predicated region
      $region21: #{tpu_custom_call.1} parent=5 // pred_check
        %p186 = pneg %p185
      $region22: #{tpu_custom_call.1} parent=5 // pred_check_branch
        %188 = sbr.rel (%p186) target = $region24
      $region23: #{tpu_custom_call.1} parent=5 // pred_region
        // Predicated region
        $region25: #{tpu_custom_call.1} parent=23 // pred_check
          %p189 = pneg %p51
        $region26: #{tpu_custom_call.1} parent=23 // pred_check_branch
          %191 = sbr.rel (%p189) target = $region28
        $region27: #{tpu_custom_call.1} parent=23 // pred_region
          %s192 = sand.u32 %s17, 1
          %s193 = scalar_lea.sflag [#allocation3], %s192
          %s194 = sand.u32 %s41, 1
          %s195 = smul.addr %s194, 8
          %s196 = scalar_lea.vmem [#allocation2], %s195
          %198 = vsyncadd %s193, 0
          %s199 = smul.addr %s24, 2
          %s200 = sadd.s32 %s25, %s199
          %s201 = smul.addr %s200, 8
          %s202 = scalar_lea.hbm %s0, %s201
          %s204 = sshll.u32 %s202, 4
          %s205 = int_to_ptr.hbm [resolvable:$true] %s204
          %s206 = sshll.u32 %s196, 4
          %s207 = int_to_ptr.vmem [resolvable:$true] %s206
          %209 = dma.hbm_to_vmem [thread:$0]  %s205, 128, %s207, %s193
        $region28: #{tpu_custom_call.1} parent=23 // pred_fallthru
          _
        // Predicated region
        $region29: #{tpu_custom_call.1} parent=23 // pred_check
          %p210 = pneg %p119
        $region30: #{tpu_custom_call.1} parent=23 // pred_check_branch
          %212 = sbr.rel (%p210) target = $region32
        $region31: #{tpu_custom_call.1} parent=23 // pred_region
          %s213 = sand.u32 %s17, 1
          %s214 = scalar_lea.sflag [#allocation3], %s213
          %s215 = sand.u32 %s109, 1
          %s216 = smul.addr %s215, 4
          %s217 = scalar_lea.vmem [#allocation7], %s216
          %219 = vsyncadd %s214, 0
          %s220 = smul.addr %s24, 2
          %s221 = smul.addr %s220, 2
          %s222 = scalar_lea.hbm %s3, %s221
          %s223 = sshll.u32 %s222, 4
          %s224 = int_to_ptr.hbm [resolvable:$true] %s223
          %s225 = sshll.u32 %s217, 4
          %s226 = int_to_ptr.vmem [resolvable:$true] %s225
          %231 = dma.hbm_to_vmem [thread:$0]  %s224, 64, %s226, %s214, 32, 32, 2
        $region32: #{tpu_custom_call.1} parent=23 // pred_fallthru
          _
      $region24: #{tpu_custom_call.1} parent=5 // pred_fallthru
        _
      %p232 = scmp.le.s32.totalorder 1, %s17
      %p233 = scmp.lt.s32.totalorder %s17, 5
      %p234 = pnand %p232, %p233
      %p235 = pneg %p234
      // Predicated region
      $region33: #{tpu_custom_call.1} parent=5 // pred_check
        _
      $region34: #{tpu_custom_call.1} parent=5 // pred_check_branch
        %237 = sbr.rel (%p234) target = $region36
      $region35: #{tpu_custom_call.1} parent=5 // pred_region
        %s238 = ssub.s32 %s17, 1
        %s239 = sand.u32 %s22, 1
        %s240 = scalar_lea.sflag [#allocation3], %s239
        %s241 = sand.u32 %s44, 1
        %s242 = smul.addr %s241, 8
        %s243 = scalar_lea.vmem [#allocation2], %s242
        // Predicated region
        $region37: #{tpu_custom_call.1} parent=35 // pred_check
          %p244 = pneg %p57
        $region38: #{tpu_custom_call.1} parent=35 // pred_check_branch
          %246 = sbr.rel (%p244) target = $region40
        $region39: #{tpu_custom_call.1} parent=35 // pred_region
          %248 = dma.done %s240, 128
        $region40: #{tpu_custom_call.1} parent=35 // pred_fallthru
          _
        // Predicated region
        $region41: #{tpu_custom_call.1} parent=35 // pred_check
          %p249 = pneg %p78
        $region42: #{tpu_custom_call.1} parent=35 // pred_check_branch
          %251 = sbr.rel (%p249) target = $region44
        $region43: #{tpu_custom_call.1} parent=35 // pred_region
          %253 = dma.done [#allocation6], 8192
        $region44: #{tpu_custom_call.1} parent=35 // pred_fallthru
          _
        %s254 = sand.u32 %s22, 1
        %s255 = scalar_lea.sflag [#allocation3], %s254
        %s256 = sand.u32 %s112, 1
        %s257 = smul.addr %s256, 4
        %s258 = scalar_lea.vmem [#allocation7], %s257
        // Predicated region
        $region45: #{tpu_custom_call.1} parent=35 // pred_check
          %p259 = pneg %p125
        $region46: #{tpu_custom_call.1} parent=35 // pred_check_branch
          %261 = sbr.rel (%p259) target = $region48
        $region47: #{tpu_custom_call.1} parent=35 // pred_region
          %263 = dma.done %s255, 64
        $region48: #{tpu_custom_call.1} parent=35 // pred_fallthru
          _
        %s264 = sand.u32 %s22, 1
        %s265 = scalar_lea.sflag [#allocation3], %s264
        %s266 = sand.u32 %s44, 1
        %s267 = smul.addr %s266, 8
        %s268 = scalar_lea.vmem [#allocation2], %s267
        %p269 = pneg %p57
        %p270 = pneg %p54
        %p271 = pneg %p78
        %p272 = pneg %p75
        %p273 = pneg %p99
        %p274 = pneg %p96
        %s275 = sand.u32 %s22, 1
        %s276 = scalar_lea.sflag [#allocation3], %s275
        %s277 = sand.u32 %s112, 1
        %s278 = smul.addr %s277, 4
        %s279 = scalar_lea.vmem [#allocation7], %s278
        %p280 = pneg %p125
        %p281 = pneg %p122
        %p282 = pneg %p153
        %p283 = pneg %p150
        %s284 = sand.u32 %s140, 1
        %s285 = scalar_lea.sflag [#allocation4], %s284
        %s286 = sand.u32 %s140, 1
        %s287 = smul.addr %s286, 16
        %s288 = scalar_lea.vmem [#allocation8], %s287
        %v289 = vld [vmem:[%s243] sm:$0xff]
        %v290 = vld [vmem:[#allocation5] sm:$0xff]
        %v291 = vld [vmem:[#allocation5 + $0x8] sm:$0xff]
        %v292 = vld [vmem:[#allocation5 + $0x10] sm:$0xff]
        %v293 = vld [vmem:[#allocation5 + $0x18] sm:$0xff]
        %v294 = vld [vmem:[#allocation5 + $0x20] sm:$0xff]
        %v295 = vld [vmem:[#allocation5 + $0x28] sm:$0xff]
        %v296 = vld [vmem:[#allocation5 + $0x30] sm:$0xff]
        %v297 = vld [vmem:[#allocation5 + $0x38] sm:$0xff]
        %v298 = vld [vmem:[#allocation5 + $0x40] sm:$0xff]
        %v299 = vld [vmem:[#allocation5 + $0x48] sm:$0xff]
        %v300 = vld [vmem:[#allocation5 + $0x50] sm:$0xff]
        %v301 = vld [vmem:[#allocation5 + $0x58] sm:$0xff]
        %v302 = vld [vmem:[#allocation5 + $0x60] sm:$0xff]
        %v303 = vld [vmem:[#allocation5 + $0x68] sm:$0xff]
        %v304 = vld [vmem:[#allocation5 + $0x70] sm:$0xff]
        %v305 = vld [vmem:[#allocation5 + $0x78] sm:$0xff]
        %v306 = vld [vmem:[#allocation5 + $0x80] sm:$0xff]
        %v307 = vld [vmem:[#allocation5 + $0x88] sm:$0xff]
        %v308 = vld [vmem:[#allocation5 + $0x90] sm:$0xff]
        %v309 = vld [vmem:[#allocation5 + $0x98] sm:$0xff]
        %v310 = vld [vmem:[#allocation5 + $0xa0] sm:$0xff]
        %v311 = vld [vmem:[#allocation5 + $0xa8] sm:$0xff]
        %v312 = vld [vmem:[#allocation5 + $0xb0] sm:$0xff]
        %v313 = vld [vmem:[#allocation5 + $0xb8] sm:$0xff]
        %v314 = vld [vmem:[#allocation5 + $0xc0] sm:$0xff]
        %v315 = vld [vmem:[#allocation5 + $0xc8] sm:$0xff]
        %v316 = vld [vmem:[#allocation5 + $0xd0] sm:$0xff]
        %v317 = vld [vmem:[#allocation5 + $0xd8] sm:$0xff]
        %v318 = vld [vmem:[#allocation5 + $0xe0] sm:$0xff]
        %v319 = vld [vmem:[#allocation5 + $0xe8] sm:$0xff]
        %v320 = vld [vmem:[#allocation5 + $0xf0] sm:$0xff]
        %v321 = vld [vmem:[#allocation5 + $0xf8] sm:$0xff]
        %v322 = vld [vmem:[#allocation5 + $0x100] sm:$0xff]
        %v323 = vld [vmem:[#allocation5 + $0x108] sm:$0xff]
        %v324 = vld [vmem:[#allocation5 + $0x110] sm:$0xff]
        %v325 = vld [vmem:[#allocation5 + $0x118] sm:$0xff]
        %v326 = vld [vmem:[#allocation5 + $0x120] sm:$0xff]
        %v327 = vld [vmem:[#allocation5 + $0x128] sm:$0xff]
        %v328 = vld [vmem:[#allocation5 + $0x130] sm:$0xff]
        %v329 = vld [vmem:[#allocation5 + $0x138] sm:$0xff]
        %v330 = vld [vmem:[#allocation5 + $0x140] sm:$0xff]
        %v331 = vld [vmem:[#allocation5 + $0x148] sm:$0xff]
        %v332 = vld [vmem:[#allocation5 + $0x150] sm:$0xff]
        %v333 = vld [vmem:[#allocation5 + $0x158] sm:$0xff]
        %v334 = vld [vmem:[#allocation5 + $0x160] sm:$0xff]
        %v335 = vld [vmem:[#allocation5 + $0x168] sm:$0xff]
        %v336 = vld [vmem:[#allocation5 + $0x170] sm:$0xff]
        %v337 = vld [vmem:[#allocation5 + $0x178] sm:$0xff]
        %v338 = vld [vmem:[#allocation5 + $0x180] sm:$0xff]
        %v339 = vld [vmem:[#allocation5 + $0x188] sm:$0xff]
        %v340 = vld [vmem:[#allocation5 + $0x190] sm:$0xff]
        %v341 = vld [vmem:[#allocation5 + $0x198] sm:$0xff]
        %v342 = vld [vmem:[#allocation5 + $0x1a0] sm:$0xff]
        %v343 = vld [vmem:[#allocation5 + $0x1a8] sm:$0xff]
        %v344 = vld [vmem:[#allocation5 + $0x1b0] sm:$0xff]
        %v345 = vld [vmem:[#allocation5 + $0x1b8] sm:$0xff]
        %v346 = vld [vmem:[#allocation5 + $0x1c0] sm:$0xff]
        %v347 = vld [vmem:[#allocation5 + $0x1c8] sm:$0xff]
        %v348 = vld [vmem:[#allocation5 + $0x1d0] sm:$0xff]
        %v349 = vld [vmem:[#allocation5 + $0x1d8] sm:$0xff]
        %v350 = vld [vmem:[#allocation5 + $0x1e0] sm:$0xff]
        %v351 = vld [vmem:[#allocation5 + $0x1e8] sm:$0xff]
        %v352 = vld [vmem:[#allocation5 + $0x1f0] sm:$0xff]
        %v353 = vld [vmem:[#allocation5 + $0x1f8] sm:$0xff]
        %354 = vmatpush.msra.mxu0 %v350
        %355 = vmatpush.msra.mxu0 %v346
        %356 = vmatpush.msra.mxu0 %v342
        %357 = vmatpush.msra.mxu0 %v338
        %358 = vmatpush.msra.mxu0 %v334
        %359 = vmatpush.msra.mxu0 %v330
        %360 = vmatpush.msra.mxu0 %v326
        %361 = vmatpush.msra.mxu0 %v322
        %362 = vmatpush.msra.mxu0 %v318
        %363 = vmatpush.msra.mxu0 %v314
        %364 = vmatpush.msra.mxu0 %v310
        %365 = vmatpush.msra.mxu0 %v306
        %366 = vmatpush.msra.mxu0 %v302
        %367 = vmatpush.msra.mxu0 %v298
        %368 = vmatpush.msra.mxu0 %v294
        %369 = vmatpush.msra.mxu0 %v290
        %370 = vmatmul.f32.gmra.mxu0 %v289
        %v371 = vpop.f32.mrf.mxu0
        %v372 = vadd.f32 0.0, %v371
        %373 = vdwg.mxu0
        %374 = vmatpush.msra.mxu0 %v351
        %375 = vmatpush.msra.mxu0 %v347
        %376 = vmatpush.msra.mxu0 %v343
        %377 = vmatpush.msra.mxu0 %v339
        %378 = vmatpush.msra.mxu0 %v335
        %379 = vmatpush.msra.mxu0 %v331
        %380 = vmatpush.msra.mxu0 %v327
        %381 = vmatpush.msra.mxu0 %v323
        %382 = vmatpush.msra.mxu0 %v319
        %383 = vmatpush.msra.mxu0 %v315
        %384 = vmatpush.msra.mxu0 %v311
        %385 = vmatpush.msra.mxu0 %v307
        %386 = vmatpush.msra.mxu0 %v303
        %387 = vmatpush.msra.mxu0 %v299
        %388 = vmatpush.msra.mxu0 %v295
        %389 = vmatpush.msra.mxu0 %v291
        %390 = vmatmul.f32.gmra.mxu0 %v289
        %v391 = vpop.f32.mrf.mxu0
        %v392 = vadd.f32 0.0, %v391
        %393 = vdwg.mxu0
        %394 = vmatpush.msra.mxu0 %v352
        %395 = vmatpush.msra.mxu0 %v348
        %396 = vmatpush.msra.mxu0 %v344
        %397 = vmatpush.msra.mxu0 %v340
        %398 = vmatpush.msra.mxu0 %v336
        %399 = vmatpush.msra.mxu0 %v332
        %400 = vmatpush.msra.mxu0 %v328
        %401 = vmatpush.msra.mxu0 %v324
        %402 = vmatpush.msra.mxu0 %v320
        %403 = vmatpush.msra.mxu0 %v316
        %404 = vmatpush.msra.mxu0 %v312
        %405 = vmatpush.msra.mxu0 %v308
        %406 = vmatpush.msra.mxu0 %v304
        %407 = vmatpush.msra.mxu0 %v300
        %408 = vmatpush.msra.mxu0 %v296
        %409 = vmatpush.msra.mxu0 %v292
        %410 = vmatmul.f32.gmra.mxu0 %v289
        %v411 = vpop.f32.mrf.mxu0
        %v412 = vadd.f32 0.0, %v411
        %413 = vdwg.mxu0
        %414 = vmatpush.msra.mxu0 %v353
        %415 = vmatpush.msra.mxu0 %v349
        %416 = vmatpush.msra.mxu0 %v345
        %417 = vmatpush.msra.mxu0 %v341
        %418 = vmatpush.msra.mxu0 %v337
        %419 = vmatpush.msra.mxu0 %v333
        %420 = vmatpush.msra.mxu0 %v329
        %421 = vmatpush.msra.mxu0 %v325
        %422 = vmatpush.msra.mxu0 %v321
        %423 = vmatpush.msra.mxu0 %v317
        %424 = vmatpush.msra.mxu0 %v313
        %425 = vmatpush.msra.mxu0 %v309
        %426 = vmatpush.msra.mxu0 %v305
        %427 = vmatpush.msra.mxu0 %v301
        %428 = vmatpush.msra.mxu0 %v297
        %429 = vmatpush.msra.mxu0 %v293
        %430 = vmatmul.f32.gmra.mxu0 %v289
        %v431 = vpop.f32.mrf.mxu0
        %v432 = vadd.f32 0.0, %v431
        %433 = vdwg.mxu0
        %s434 = smul.u32 %s27, 2
        %s435 = scalar_lea.vmem %s258, %s434 [#allocation7]
        %v436 = vld [vmem:[%s435] sm:$0x3]
        %437 = vmatpush.msra.mxu0 %v350
        %438 = vmatpush.msra.mxu0 %v346
        %439 = vmatpush.msra.mxu0 %v342
        %440 = vmatpush.msra.mxu0 %v338
        %441 = vmatpush.msra.mxu0 %v334
        %442 = vmatpush.msra.mxu0 %v330
        %443 = vmatpush.msra.mxu0 %v326
        %444 = vmatpush.msra.mxu0 %v322
        %445 = vmatpush.msra.mxu0 %v318
        %446 = vmatpush.msra.mxu0 %v314
        %447 = vmatpush.msra.mxu0 %v310
        %448 = vmatpush.msra.mxu0 %v306
        %449 = vmatpush.msra.mxu0 %v302
        %450 = vmatpush.msra.mxu0 %v298
        %451 = vmatpush.msra.mxu0 %v294
        %452 = vmatpush.msra.mxu0 %v290
        %453 = vmatmul.f32.gmra.mxu0 %v436
        %v454 = vpop.f32.mrf.mxu0
        %v455 = vadd.f32 0.0, %v454
        %456 = vdwg.mxu0
        %457 = vmatpush.msra.mxu0 %v353
        %458 = vmatpush.msra.mxu0 %v349
        %459 = vmatpush.msra.mxu0 %v345
        %460 = vmatpush.msra.mxu0 %v341
        %461 = vmatpush.msra.mxu0 %v337
        %462 = vmatpush.msra.mxu0 %v333
        %463 = vmatpush.msra.mxu0 %v329
        %464 = vmatpush.msra.mxu0 %v325
        %465 = vmatpush.msra.mxu0 %v321
        %466 = vmatpush.msra.mxu0 %v317
        %467 = vmatpush.msra.mxu0 %v313
        %468 = vmatpush.msra.mxu0 %v309
        %469 = vmatpush.msra.mxu0 %v305
        %470 = vmatpush.msra.mxu0 %v301
        %471 = vmatpush.msra.mxu0 %v297
        %472 = vmatpush.msra.mxu0 %v293
        %473 = vmatmul.f32.gmra.mxu0 %v436
        %v474 = vpop.f32.mrf.mxu0
        %v475 = vadd.f32 0.0, %v474
        %476 = vdwg.mxu0
        %v477 = vlaneseq
        %v478 = vshrl.u32 %v477, 7
        %vm479 = vcmp.eq.s32.totalorder %v478, 0
        %v480 = vrot.slane %v432, 7
        %v481 = vsel %vm479, 1, 0
        %vm482 = vcmp.eq.s32.totalorder %v481, 1
        %v483 = vperm.slane %v475, 0
        %v484 = vsel %vm482, %v483, %v480
        %vm485 = vcmp.eq.s32.totalorder %v478, 7
        %v486 = vrot.slane %v372, 1
        %v487 = vsel %vm485, 1, 0
        %vm488 = vcmp.eq.s32.totalorder %v487, 1
        %v489 = vperm.slane %v455, 1
        %v490 = vsel %vm488, %v489, %v486
        %v491 = vld [vmem:[%s2] sm:$0x1]
        %v492 = vadd.f32 %v392, %v484
        %v494 = vperm.slane %v491, 0
        %v496 = vadd.f32 %v492, %v494
        %497 = vst [vmem:[%s288] sm:$0xff] %v496
        %v498 = vadd.f32 %v412, %v490
        %v499 = vadd.f32 %v498, %v494
        %500 = vst [vmem:[%s288 + $0x8] sm:$0xff] %v499
        %s501 = sand.u32 %s140, 1
        %s502 = scalar_lea.sflag [#allocation4], %s501
        %s503 = sand.u32 %s140, 1
        %s504 = smul.addr %s503, 16
        %s505 = scalar_lea.vmem [#allocation8], %s504
        // Predicated region
        $region49: #{tpu_custom_call.1} parent=35 // pred_check
          %p506 = pneg %p150
        $region50: #{tpu_custom_call.1} parent=35 // pred_check_branch
          %508 = sbr.rel (%p506) target = $region52
        $region51: #{tpu_custom_call.1} parent=35 // pred_region
          %510 = vsyncadd %s502, 0
          %s511 = smul.addr %s27, 2
          %s512 = smul.addr %s26, 4
          %s513 = sadd.s32 %s511, %s512
          %s514 = smul.addr %s513, 8
          %s515 = scalar_lea.hbm %s4, %s514
          %s517 = sshll.u32 %s505, 4
          %s518 = int_to_ptr.vmem [resolvable:$true] %s517
          %s519 = sshll.u32 %s515, 4
          %s520 = int_to_ptr.hbm [resolvable:$true] %s519
          %522 = dma.vmem_to_hbm [thread:$0]  %s518, 256, %s520, %s502
        $region52: #{tpu_custom_call.1} parent=35 // pred_fallthru
          _
      $region36: #{tpu_custom_call.1} parent=5 // pred_fallthru
        _
      %p523 = scmp.le.s32.totalorder 2, %s17
      // Predicated region
      $region53: #{tpu_custom_call.1} parent=5 // pred_check
        %p524 = pneg %p523
      $region54: #{tpu_custom_call.1} parent=5 // pred_check_branch
        %526 = sbr.rel (%p524) target = $region56
      $region55: #{tpu_custom_call.1} parent=5 // pred_region
        %s527 = ssub.s32 %s17, 2
        // Predicated region
        $region57: #{tpu_custom_call.1} parent=55 // pred_check
          %p528 = pneg %p156
        $region58: #{tpu_custom_call.1} parent=55 // pred_check_branch
          %530 = sbr.rel (%p528) target = $region60
        $region59: #{tpu_custom_call.1} parent=55 // pred_region
          %s531 = sand.u32 %s141, 1
          %s532 = scalar_lea.sflag [#allocation4], %s531
          %s533 = sand.u32 %s141, 1
          %s534 = smul.addr %s533, 16
          %s535 = scalar_lea.vmem [#allocation8], %s534
          %537 = dma.done %s532, 256
        $region60: #{tpu_custom_call.1} parent=55 // pred_fallthru
          _
      $region56: #{tpu_custom_call.1} parent=5 // pred_fallthru
        _
    $region6: #{tpu_custom_call.1} parent=1 // loop_footer
      %s21 = sadd.s32 1, %s17
    $region7: #{tpu_custom_call.1} parent=1 // loop_footer_branch
      %16 = sbr.rel target = $region3
    $region8: #{tpu_custom_call.1} parent=1 // loop_exit
      _
    %538 = vsyncpa [#allocation3], 1
    %s539 = scalar_lea.sflag [#allocation3], 1
    %540 = vsyncpa %s539, 1
    %541 = vsyncpa [#allocation6], 1
    %542 = vsyncpa [#allocation4], 1
    %s543 = scalar_lea.sflag [#allocation4], 1
    %544 = vsyncpa %s543, 1

</llo_original>
